<compile_context>
chip_gen: v7x
topology: tpu7x:2x2x1
jax: 0.10.0
libtpu: 0.0.40
codegen_flags: <defaults>
</compile_context>

<pallas_src>
import jax
import jax.numpy as jnp
from jax.experimental import pallas as pl
from jax.experimental.pallas import tpu as pltpu


def milstm_kernel(x_ref, h_ref, c_ref, wx_ref, bx_ref, wh_ref, bh_ref,
                  a_ref, b1_ref, b2_ref, hx_ref, cx_ref):
    tH = hx_ref.shape[-1]

    # Two MXU matmuls (bf16 inputs, f32 accumulation) produce all 4 gate
    # projections for this H tile at once: (B, 4*tH).
    gx = jnp.dot(x_ref[...], wx_ref[...],
                 preferred_element_type=jnp.float32) + bx_ref[...]
    gh = jnp.dot(h_ref[...], wh_ref[...],
                 preferred_element_type=jnp.float32) + bh_ref[...]

    # alpha*gx*gh + beta1*gx + beta2*gh, factored to save one full-width mul.
    pre = gx * (a_ref[...] * gh + b1_ref[...]) + b2_ref[...] * gh

    # One wide sigmoid over the first three gates, tanh on the last.
    sig = jax.nn.sigmoid(pre[:, : 3 * tH])
    f_g = sig[:, 0 * tH:1 * tH]
    i_g = sig[:, 1 * tH:2 * tH]
    o_g = sig[:, 2 * tH:3 * tH]
    z_t = jnp.tanh(pre[:, 3 * tH:4 * tH])

    cx = f_g * c_ref[...] + i_g * z_t
    hx = o_g * jnp.tanh(cx)

    hx_ref[...] = hx.astype(hx_ref.dtype)
    cx_ref[...] = cx.astype(cx_ref.dtype)


def _reorder_gates(a, H, tile_h):
    """Reorder the last axis from gate-major [f|i|o|z] (each H wide) to
    tile-major: for each H tile of size tile_h, the four gate slices are
    contiguous: [tile0:(f,i,o,z) | tile1:(f,i,o,z) | ...]."""
    lead = a.shape[:-1]
    a = a.reshape(*lead, 4, H // tile_h, tile_h)
    a = jnp.swapaxes(a, -3, -2)
    return a.reshape(*lead, 4 * H)


def _pick_tile_h(H, IN):
    """Largest H tile (multiple of 128, dividing H) whose double-buffered bf16
    weight tiles fit a conservative VMEM budget; prefer >= 2 tiles so the grid
    can be split across v7x's two TensorCores."""
    if H % 128 != 0:
        return H                     # tiny / unaligned H: single full block
    budget = 16 * 1024 * 1024        # bytes for 2 weight tensors x 2 buffers
    best = 128
    for t in (512, 256, 128):
        if H % t != 0:
            continue
        wbytes = 2 * 2 * (IN + H) * 4 * t * 2   # 2 tensors * 2 bufs * bf16
        if wbytes <= budget:
            if H // t >= 2:
                return t
            best = t
    return best


def milstm_cell(x, h0, c0, wx, bx, wh, bh, alpha, beta1, beta2, *, tile_h=None):
    B, IN = x.shape
    _, H = h0.shape

    if tile_h is None:
        tile_h = _pick_tile_h(H, IN)
    assert H % tile_h == 0
    n_tiles = H // tile_h
    G = 4 * tile_h

    ro = lambda a: _reorder_gates(a, H, tile_h)
    # bf16 matmul operands (cast in the wrapper so they are DMA'd as bf16).
    x_bf = x.astype(jnp.bfloat16)
    h_bf = h0.astype(jnp.bfloat16)
    wx_r = ro(wx).astype(jnp.bfloat16)
    wh_r = ro(wh).astype(jnp.bfloat16)
    # f32 per-gate coefficients / biases (elementwise path stays f32).
    bx_r, bh_r = ro(bx), ro(bh)
    a_r, b1_r, b2_r = ro(alpha), ro(beta1), ro(beta2)

    in_specs = [
        pl.BlockSpec((B, IN), lambda j: (0, 0)),       # x   (resident)
        pl.BlockSpec((B, H), lambda j: (0, 0)),        # h0  (resident)
        pl.BlockSpec((B, tile_h), lambda j: (0, j)),   # c0  tile
        pl.BlockSpec((IN, G), lambda j: (0, j)),       # Wx  tile (bf16)
        pl.BlockSpec((1, G), lambda j: (0, j)),        # bx  tile
        pl.BlockSpec((H, G), lambda j: (0, j)),        # Wh  tile (bf16)
        pl.BlockSpec((1, G), lambda j: (0, j)),        # bh  tile
        pl.BlockSpec((1, G), lambda j: (0, j)),        # alpha
        pl.BlockSpec((1, G), lambda j: (0, j)),        # beta1
        pl.BlockSpec((1, G), lambda j: (0, j)),        # beta2
    ]
    out_specs = (pl.BlockSpec((B, tile_h), lambda j: (0, j)),
                 pl.BlockSpec((B, tile_h), lambda j: (0, j)))

    cost = pl.CostEstimate(
        flops=2 * B * (IN + H) * 4 * H + 10 * B * 4 * H,
        transcendentals=5 * B * H,
        bytes_accessed=(2 * (IN + H) * 4 * H          # bf16 weights
                        + 2 * B * (IN + H)            # bf16 x / h
                        + 4 * (5 * 4 * H + 3 * B * H)))

    return pl.pallas_call(
        milstm_kernel,
        out_shape=(jax.ShapeDtypeStruct((B, H), jnp.float32),
                   jax.ShapeDtypeStruct((B, H), jnp.float32)),
        grid=(n_tiles,),
        in_specs=in_specs,
        out_specs=out_specs,
        compiler_params=pltpu.CompilerParams(
            dimension_semantics=("parallel",),
            vmem_limit_bytes=32 * 1024 * 1024),
        cost_estimate=cost,
    )(x_bf, h_bf, c0, wx_r, bx_r, wh_r, bh_r, a_r, b1_r, b2_r)


def milstm_ref(x, h0, c0, wx, bx, wh, bh, alpha, beta1, beta2,
               matmul_dtype=jnp.float32):
    """Pure-JAX reference (mirrors the PyTorch forward; optional bf16 matmuls)."""
    H = h0.shape[-1]
    gx = jnp.dot(x.astype(matmul_dtype), wx.astype(matmul_dtype),
                 preferred_element_type=jnp.float32) + bx
    gh = jnp.dot(h0.astype(matmul_dtype), wh.astype(matmul_dtype),
                 preferred_element_type=jnp.float32) + bh
    pre = alpha * gx * gh + beta1 * gx + beta2 * gh
    f_g = jax.nn.sigmoid(pre[:, 0 * H:1 * H])
    i_g = jax.nn.sigmoid(pre[:, 1 * H:2 * H])
    o_g = jax.nn.sigmoid(pre[:, 2 * H:3 * H])
    z_t = jnp.tanh(pre[:, 3 * H:4 * H])
    cx = f_g * c0 + i_g * z_t
    hx = o_g * jnp.tanh(cx)
    return hx, cx


if __name__ == "__main__":
    # Small shapes consistent with the module (input_size, hidden_size configurable).
    B, IN, H = 8, 256, 256

    key = jax.random.PRNGKey(0)
    ks = jax.random.split(key, 8)

    def linear_params(kw, kb, fan_in, fan_out):
        bound = 1.0 / (fan_in ** 0.5)
        w = jax.random.uniform(kw, (fan_in, fan_out), jnp.float32, -bound, bound)
        b = jax.random.uniform(kb, (1, fan_out), jnp.float32, -bound, bound)
        return w, b

    # Gate order along the 4*H axis: [f, i, o, z]
    wx, bx = linear_params(ks[0], ks[1], IN, 4 * H)
    wh, bh = linear_params(ks[2], ks[3], H, 4 * H)

    # alpha / beta parameters are initialized to ones in the module.
    alpha = jnp.ones((1, 4 * H), jnp.float32)
    beta1 = jnp.ones((1, 4 * H), jnp.float32)
    beta2 = jnp.ones((1, 4 * H), jnp.float32)

    x = jax.random.normal(ks[4], (B, IN), jnp.float32)
    h0 = jax.random.normal(ks[5], (B, H), jnp.float32)
    c0 = jax.random.normal(ks[6], (B, H), jnp.float32)

    hx, cx = milstm_cell(x, h0, c0, wx, bx, wh, bh, alpha, beta1, beta2)
    jax.block_until_ready((hx, cx))

    # Tight check vs. a reference with the same bf16-matmul / f32-accumulate precision.
    hx_bf, cx_bf = milstm_ref(x, h0, c0, wx, bx, wh, bh, alpha, beta1, beta2,
                              matmul_dtype=jnp.bfloat16)
    assert jnp.allclose(hx, hx_bf, atol=1e-4, rtol=1e-4)
    assert jnp.allclose(cx, cx_bf, atol=1e-4, rtol=1e-4)

    # Loose check vs. the full-f32 PyTorch-equivalent forward.
    hx_f32, cx_f32 = milstm_ref(x, h0, c0, wx, bx, wh, bh, alpha, beta1, beta2)
    assert jnp.allclose(hx, hx_f32, atol=5e-2, rtol=5e-2)
    assert jnp.allclose(cx, cx_f32, atol=5e-2, rtol=5e-2)

    print("KERNEL_OK")
</pallas_src>

<mosaic_0001>
module attributes {stable_mosaic.version = 11 : i64} {
  func.func @milstm_kernel(%arg0: i32, %arg1: memref<8x256xbf16, #tpu.memory_space<vmem>>, %arg2: memref<8x256xbf16, #tpu.memory_space<vmem>>, %arg3: memref<8x128xf32, #tpu.memory_space<vmem>>, %arg4: memref<256x512xbf16, #tpu.memory_space<vmem>>, %arg5: memref<1x512xf32, #tpu.memory_space<vmem>>, %arg6: memref<256x512xbf16, #tpu.memory_space<vmem>>, %arg7: memref<1x512xf32, #tpu.memory_space<vmem>>, %arg8: memref<1x512xf32, #tpu.memory_space<vmem>>, %arg9: memref<1x512xf32, #tpu.memory_space<vmem>>, %arg10: memref<1x512xf32, #tpu.memory_space<vmem>>, %arg11: memref<8x128xf32, #tpu.memory_space<vmem>>, %arg12: memref<8x128xf32, #tpu.memory_space<vmem>>) attributes {dimension_semantics = [#tpu.dimension_semantics<parallel>], iteration_bounds = array<i64: 2>, scalar_prefetch = 0 : i64, scratch_operands = 0 : i64, tpu.core_type = #tpu.core_type<tc>, window_params = [{pipeline_mode = #tpu.pipeline_mode<synchronous>, transform_indices = @transform_0, window_bounds = array<i64: 8, 256>}, {pipeline_mode = #tpu.pipeline_mode<synchronous>, transform_indices = @transform_1, window_bounds = array<i64: 8, 256>}, {transform_indices = @transform_2, window_bounds = array<i64: 8, 128>}, {transform_indices = @transform_3, window_bounds = array<i64: 256, 512>}, {transform_indices = @transform_4, window_bounds = array<i64: 1, 512>}, {transform_indices = @transform_5, window_bounds = array<i64: 256, 512>}, {transform_indices = @transform_6, window_bounds = array<i64: 1, 512>}, {transform_indices = @transform_7, window_bounds = array<i64: 1, 512>}, {transform_indices = @transform_8, window_bounds = array<i64: 1, 512>}, {transform_indices = @transform_9, window_bounds = array<i64: 1, 512>}, {transform_indices = @transform_10, window_bounds = array<i64: 8, 128>}, {transform_indices = @transform_11, window_bounds = array<i64: 8, 128>}]} {
    %c0 = arith.constant 0 : index
    %c0_0 = arith.constant 0 : index
    %0 = vector.load %arg1[%c0, %c0_0] : memref<8x256xbf16, #tpu.memory_space<vmem>>, vector<8x256xbf16>
    %c0_1 = arith.constant 0 : index
    %c0_2 = arith.constant 0 : index
    %1 = vector.load %arg4[%c0_1, %c0_2] : memref<256x512xbf16, #tpu.memory_space<vmem>>, vector<256x512xbf16>
    %cst = arith.constant dense<0.000000e+00> : vector<8x512xf32>
    %2 = tpu.matmul %0, %1, %cst {dimension_numbers = #tpu.dot_dimension_numbers<[1], [0], [0], [1], [0, 0, 1, 1], [], []>} : vector<8x256xbf16>, vector<256x512xbf16>, vector<8x512xf32> -> vector<8x512xf32>
    %c0_3 = arith.constant 0 : index
    %c0_4 = arith.constant 0 : index
    %3 = vector.load %arg5[%c0_3, %c0_4] : memref<1x512xf32, #tpu.memory_space<vmem>>, vector<1x512xf32>
    %4 = vector.broadcast %3 : vector<1x512xf32> to vector<8x512xf32>
    %5 = arith.addf %2, %4 : vector<8x512xf32>
    %c0_5 = arith.constant 0 : index
    %c0_6 = arith.constant 0 : index
    %6 = vector.load %arg2[%c0_5, %c0_6] : memref<8x256xbf16, #tpu.memory_space<vmem>>, vector<8x256xbf16>
    %c0_7 = arith.constant 0 : index
    %c0_8 = arith.constant 0 : index
    %7 = vector.load %arg6[%c0_7, %c0_8] : memref<256x512xbf16, #tpu.memory_space<vmem>>, vector<256x512xbf16>
    %cst_9 = arith.constant dense<0.000000e+00> : vector<8x512xf32>
    %8 = tpu.matmul %6, %7, %cst_9 {dimension_numbers = #tpu.dot_dimension_numbers<[1], [0], [0], [1], [0, 0, 1, 1], [], []>} : vector<8x256xbf16>, vector<256x512xbf16>, vector<8x512xf32> -> vector<8x512xf32>
    %c0_10 = arith.constant 0 : index
    %c0_11 = arith.constant 0 : index
    %9 = vector.load %arg7[%c0_10, %c0_11] : memref<1x512xf32, #tpu.memory_space<vmem>>, vector<1x512xf32>
    %10 = vector.broadcast %9 : vector<1x512xf32> to vector<8x512xf32>
    %11 = arith.addf %8, %10 : vector<8x512xf32>
    %c0_12 = arith.constant 0 : index
    %c0_13 = arith.constant 0 : index
    %12 = vector.load %arg8[%c0_12, %c0_13] : memref<1x512xf32, #tpu.memory_space<vmem>>, vector<1x512xf32>
    %13 = vector.broadcast %12 : vector<1x512xf32> to vector<8x512xf32>
    %14 = arith.mulf %13, %11 : vector<8x512xf32>
    %c0_14 = arith.constant 0 : index
    %c0_15 = arith.constant 0 : index
    %15 = vector.load %arg9[%c0_14, %c0_15] : memref<1x512xf32, #tpu.memory_space<vmem>>, vector<1x512xf32>
    %16 = vector.broadcast %15 : vector<1x512xf32> to vector<8x512xf32>
    %17 = arith.addf %14, %16 : vector<8x512xf32>
    %18 = arith.mulf %5, %17 : vector<8x512xf32>
    %c0_16 = arith.constant 0 : index
    %c0_17 = arith.constant 0 : index
    %19 = vector.load %arg10[%c0_16, %c0_17] : memref<1x512xf32, #tpu.memory_space<vmem>>, vector<1x512xf32>
    %20 = vector.broadcast %19 : vector<1x512xf32> to vector<8x512xf32>
    %21 = arith.mulf %20, %11 : vector<8x512xf32>
    %22 = arith.addf %18, %21 : vector<8x512xf32>
    %23 = vector.extract_strided_slice %22 {offsets = [0, 0], sizes = [8, 384], strides = [1, 1]} : vector<8x512xf32> to vector<8x384xf32>
    %24 = arith.negf %23 : vector<8x384xf32>
    %25 = math.exp %24 : vector<8x384xf32>
    %cst_18 = arith.constant 1.000000e+00 : f32
    %26 = vector.broadcast %cst_18 : f32 to vector<8x384xf32>
    %27 = arith.addf %26, %25 : vector<8x384xf32>
    %28 = arith.divf %26, %27 : vector<8x384xf32>
    %29 = vector.extract_strided_slice %28 {offsets = [0, 0], sizes = [8, 128], strides = [1, 1]} : vector<8x384xf32> to vector<8x128xf32>
    %30 = vector.extract_strided_slice %28 {offsets = [0, 128], sizes = [8, 128], strides = [1, 1]} : vector<8x384xf32> to vector<8x128xf32>
    %31 = vector.extract_strided_slice %28 {offsets = [0, 256], sizes = [8, 128], strides = [1, 1]} : vector<8x384xf32> to vector<8x128xf32>
    %32 = vector.extract_strided_slice %22 {offsets = [0, 384], sizes = [8, 128], strides = [1, 1]} : vector<8x512xf32> to vector<8x128xf32>
    %33 = math.tanh %32 : vector<8x128xf32>
    %c0_19 = arith.constant 0 : index
    %c0_20 = arith.constant 0 : index
    %34 = vector.load %arg3[%c0_19, %c0_20] : memref<8x128xf32, #tpu.memory_space<vmem>>, vector<8x128xf32>
    %35 = arith.mulf %29, %34 : vector<8x128xf32>
    %36 = arith.mulf %30, %33 : vector<8x128xf32>
    %37 = arith.addf %35, %36 : vector<8x128xf32>
    %38 = math.tanh %37 : vector<8x128xf32>
    %39 = arith.mulf %31, %38 : vector<8x128xf32>
    %c0_21 = arith.constant 0 : index
    %c0_22 = arith.constant 0 : index
    %40 = vector.load %arg11[%c0_21, %c0_22] : memref<8x128xf32, #tpu.memory_space<vmem>>, vector<8x128xf32>
    tpu.vector_store %arg11[%c0_21, %c0_22], %39 {strides = array<i32>} : memref<8x128xf32, #tpu.memory_space<vmem>>, vector<8x128xf32>,
    %c0_23 = arith.constant 0 : index
    %c0_24 = arith.constant 0 : index
    %41 = vector.load %arg12[%c0_23, %c0_24] : memref<8x128xf32, #tpu.memory_space<vmem>>, vector<8x128xf32>
    tpu.vector_store %arg12[%c0_23, %c0_24], %37 {strides = array<i32>} : memref<8x128xf32, #tpu.memory_space<vmem>>, vector<8x128xf32>,
    return
  }
  func.func @transform_0(%arg0: i32) -> (i32, i32) {
    %c0_i32 = arith.constant 0 : i32
    %c0_i32_0 = arith.constant 0 : i32
    %c0_i32_1 = arith.constant 0 : i32
    return %c0_i32, %c0_i32_0 : i32, i32
  }
  func.func @transform_1(%arg0: i32) -> (i32, i32) {
    %c0_i32 = arith.constant 0 : i32
    %c0_i32_0 = arith.constant 0 : i32
    %c0_i32_1 = arith.constant 0 : i32
    return %c0_i32, %c0_i32_0 : i32, i32
  }
  func.func @transform_2(%arg0: i32) -> (i32, i32) {
    %c0_i32 = arith.constant 0 : i32
    %c0_i32_0 = arith.constant 0 : i32
    return %c0_i32, %arg0 : i32, i32
  }
  func.func @transform_3(%arg0: i32) -> (i32, i32) {
    %c0_i32 = arith.constant 0 : i32
    %c0_i32_0 = arith.constant 0 : i32
    return %c0_i32, %arg0 : i32, i32
  }
  func.func @transform_4(%arg0: i32) -> (i32, i32) {
    %c0_i32 = arith.constant 0 : i32
    %c0_i32_0 = arith.constant 0 : i32
    return %c0_i32, %arg0 : i32, i32
  }
  func.func @transform_5(%arg0: i32) -> (i32, i32) {
    %c0_i32 = arith.constant 0 : i32
    %c0_i32_0 = arith.constant 0 : i32
    return %c0_i32, %arg0 : i32, i32
  }
  func.func @transform_6(%arg0: i32) -> (i32, i32) {
    %c0_i32 = arith.constant 0 : i32
    %c0_i32_0 = arith.constant 0 : i32
    return %c0_i32, %arg0 : i32, i32
  }
  func.func @transform_7(%arg0: i32) -> (i32, i32) {
    %c0_i32 = arith.constant 0 : i32
    %c0_i32_0 = arith.constant 0 : i32
    return %c0_i32, %arg0 : i32, i32
  }
  func.func @transform_8(%arg0: i32) -> (i32, i32) {
    %c0_i32 = arith.constant 0 : i32
    %c0_i32_0 = arith.constant 0 : i32
    return %c0_i32, %arg0 : i32, i32
  }
  func.func @transform_9(%arg0: i32) -> (i32, i32) {
    %c0_i32 = arith.constant 0 : i32
    %c0_i32_0 = arith.constant 0 : i32
    return %c0_i32, %arg0 : i32, i32
  }
  func.func @transform_10(%arg0: i32) -> (i32, i32) {
    %c0_i32 = arith.constant 0 : i32
    %c0_i32_0 = arith.constant 0 : i32
    return %c0_i32, %arg0 : i32, i32
  }
  func.func @transform_11(%arg0: i32) -> (i32, i32) {
    %c0_i32 = arith.constant 0 : i32
    %c0_i32_0 = arith.constant 0 : i32
    return %c0_i32, %arg0 : i32, i32
  }
}

</mosaic_0001>

<llo_original>
// kernel: tpu_custom_call.1
$region0: #{tpu_custom_call.1}
  #allocation0 [shape = 'u32[]', space=smem, size = 0x4, offset = 0x4, fixed_abs, tag = 'smem constant byte address 0x4 - core index']
  #allocation1 [shape = 'u32[144,128]{1,0:T(1,128)}', space=vmem, size = 0x12000, scoped, tag = 'internal scratch']
  %s0 = inlined_call_operand.hbm [shape: bf16[8,256], index: 0, kind: input, shape index: {}]
  %s1 = inlined_call_operand.hbm [shape: bf16[8,256], index: 1, kind: input, shape index: {}]
  %s2 = inlined_call_operand.hbm [shape: f32[8,256], index: 2, kind: input, shape index: {}]
  %s3 = inlined_call_operand.hbm [shape: bf16[256,1024], index: 3, kind: input, shape index: {}]
  %s4 = inlined_call_operand.vmem [shape: f32[1,1024], index: 4, kind: input, shape index: {}]
  %s5 = inlined_call_operand.hbm [shape: bf16[256,1024], index: 5, kind: input, shape index: {}]
  %s6 = inlined_call_operand.vmem [shape: f32[1,1024], index: 6, kind: input, shape index: {}]
  %s7 = inlined_call_operand.vmem [shape: f32[1,1024], index: 7, kind: input, shape index: {}]
  %s8 = inlined_call_operand.hbm [shape: f32[1,1024], index: 8, kind: input, shape index: {}]
  %s9 = inlined_call_operand.vmem [shape: f32[1,1024], index: 9, kind: input, shape index: {}]
  %s10 = inlined_call_operand.hbm [shape: f32[8,256], index: 10, kind: output, shape index: {0}]
  %s11 = inlined_call_operand.hbm [shape: f32[8,256], index: 11, kind: output, shape index: {1}]
  %12 = xla_tuple %s10, %s11
  %s13 = sld [smem:[#allocation0]]
  $region105: #{tpu_custom_call.1} parent=0
    _
  %s15 = ssub.s32 1, %s13
  %s16 = scalar_select 0, %s15, %s13
  $region1: #{tpu_custom_call.1} parent=0
    #allocation2 [shape = 'u8[4096]{0}', space=vmem, size = 0x1000, scoped, tag = 'input window, operand 0, single buffered']
    #allocation3 [shape = 's32[2]{0}', space=sflag, size = 0x8, scoped, tag = 'scoped memory for tpu_custom_call.1']
    #allocation4 [shape = 's32[2]{0}', space=sflag, size = 0x8, scoped, tag = 'scoped memory for tpu_custom_call.1']
    #allocation5 [shape = 'u8[4096]{0}', space=vmem, size = 0x1000, scoped, tag = 'input window, operand 1, single buffered']
    #allocation6 [shape = 's32[1]{0}', space=sflag, size = 0x4, scoped, tag = 'scoped memory for tpu_custom_call.1']
    #allocation7 [shape = 'u8[8192]{0}', space=vmem, size = 0x2000, scoped, tag = 'input window, operand 2']
    #allocation8 [shape = 'u8[524288]{0}', space=vmem, size = 0x80000, scoped, tag = 'input window, operand 3']
    #allocation9 [shape = 'u8[524288]{0}', space=vmem, size = 0x80000, scoped, tag = 'input window, operand 5']
    #allocation10 [shape = 'u8[4096]{0}', space=vmem, size = 0x1000, scoped, tag = 'input window, operand 8']
    #allocation11 [shape = 'u8[8192]{0}', space=vmem, size = 0x2000, scoped, tag = 'output window, operand 0']
    #allocation12 [shape = 'u8[8192]{0}', space=vmem, size = 0x2000, scoped, tag = 'output window, operand 1']
    #allocation13 [shape = 's32[2]{0}', space=sflag, size = 0x8, scoped, tag = 'scoped memory for tpu_custom_call.1']
    %17 = vsyncpa [#allocation3], 0
    %18 = vsyncpa [#allocation6], 0
    %19 = vsyncpa [#allocation4], 0
    %s20 = scalar_lea.sflag [#allocation4], 1
    %21 = vsyncpa %s20, 0
    %22 = vsyncpa [#allocation13], 0
    %s23 = scalar_lea.sflag [#allocation13], 1
    %24 = vsyncpa %s23, 0
    loop: start=0, step=1, limit=4
    $region2: #{tpu_custom_call.1} parent=1 // loop_pre_header
      _
    $region3: #{tpu_custom_call.1} parent=1 // loop_header
      %s26 = sphi 0, %s30
      %p27 = scmp.ge.s32.totalorder %s26, 4
      %s34 = sphi 0, %s34
      %s36 = sphi 0, %s34
      %s37 = sphi 0, %s36
      %s51 = sphi 0, %s37
      %s55 = sphi 0, %s55
      %s57 = sphi 0, %s55
      %s58 = sphi 0, %s57
      %s72 = sphi 0, %s58
      %s78 = sphi 0, %s80
      %s81 = sphi 0, %s78
      %s82 = sphi 0, %s81
      %s98 = sphi 0, %s82
      %s104 = sphi 0, %s106
      %s107 = sphi 0, %s104
      %s108 = sphi 0, %s107
      %s124 = sphi 0, %s108
      %s130 = sphi 0, %s132
      %s133 = sphi 0, %s130
      %s134 = sphi 0, %s133
      %s150 = sphi 0, %s134
      %s156 = sphi 0, %s158
      %s159 = sphi 0, %s156
      %s160 = sphi 0, %s159
      %s176 = sphi 0, %s160
      %s182 = sphi 0, %s184
      %s185 = sphi 0, %s182
      %s186 = sphi 0, %s185
      %s202 = sphi 0, %s186
      %s208 = sphi 0, %s210
      %s211 = sphi 0, %s208
      %s212 = sphi 0, %s211
      %s228 = sphi 0, %s212
      %s234 = sphi 0, %s236
      %s237 = sphi 0, %s234
      %s238 = sphi 0, %s237
      %s254 = sphi 0, %s238
      %s260 = sphi 0, %s262
      %s263 = sphi 0, %s260
      %s264 = sphi 0, %s263
      %s280 = sphi 0, %s264
      %s286 = sphi 0, %s288
      %s289 = sphi 0, %s286
      %s290 = sphi 0, %s289
      %s306 = sphi 0, %s290
      %s312 = sphi 0, %s314
      %s315 = sphi 0, %s312
      %s316 = sphi 0, %s315
      %s332 = sphi 0, %s316
    $region4: #{tpu_custom_call.1} parent=1 // loop_header_branch
      %29 = sbr.rel (%p27) target = $region8
    $region5: #{tpu_custom_call.1} parent=1 // loop_body
      %s31 = ssub.s32 %s26, 1
      %s32 = ssub.s32 %s26, 2
      %s33 = sadd.s32 %s26, 1
      %s35 = sadd.s32 %s34, 1
      %p38 = scmp.eq.s32.totalorder %s26, 1
      %p39 = scmp.ne.s32.totalorder %s34, %s36
      %p40 = scmp.eq.s32.totalorder %s26, 0
      %p41 = por %p39, %p40
      %p42 = scmp.ne.s32.totalorder %s34, %s36
      %p43 = scmp.eq.s32.totalorder %s31, 1
      %p44 = por %p42, %p43
      %p45 = scmp.ne.s32.totalorder %s36, %s37
      %p46 = scmp.eq.s32.totalorder %s31, 0
      %p47 = por %p45, %p46
      %p48 = scmp.ne.s32.totalorder %s36, %s37
      %p49 = scmp.eq.s32.totalorder %s32, 1
      %p50 = por %p48, %p49
      %p52 = scmp.ne.s32.totalorder %s37, %s51
      %p53 = scmp.eq.s32.totalorder %s32, 0
      %p54 = por %p52, %p53
      %s56 = sadd.s32 %s55, 1
      %p59 = scmp.eq.s32.totalorder %s26, 1
      %p60 = scmp.ne.s32.totalorder %s55, %s57
      %p61 = scmp.eq.s32.totalorder %s26, 0
      %p62 = por %p60, %p61
      %p63 = scmp.ne.s32.totalorder %s55, %s57
      %p64 = scmp.eq.s32.totalorder %s31, 1
      %p65 = por %p63, %p64
      %p66 = scmp.ne.s32.totalorder %s57, %s58
      %p67 = scmp.eq.s32.totalorder %s31, 0
      %p68 = por %p66, %p67
      %p69 = scmp.ne.s32.totalorder %s57, %s58
      %p70 = scmp.eq.s32.totalorder %s32, 1
      %p71 = por %p69, %p70
      %p73 = scmp.ne.s32.totalorder %s58, %s72
      %p74 = scmp.eq.s32.totalorder %s32, 0
      %p75 = por %p73, %p74
      %s76 = ssub.s32 %s26, %s33
      %p77 = scmp.eq.s32.totalorder %s76, 0
      %s79 = sadd.s32 %s78, 1
      %s80 = scalar_select %p77, %s78, %s79
      %p83 = pneg %p77
      %p84 = scmp.eq.s32.totalorder %s26, 1
      %p85 = por %p83, %p84
      %p86 = scmp.ne.s32.totalorder %s78, %s81
      %p87 = scmp.eq.s32.totalorder %s26, 0
      %p88 = por %p86, %p87
      %p89 = scmp.ne.s32.totalorder %s78, %s81
      %p90 = scmp.eq.s32.totalorder %s31, 1
      %p91 = por %p89, %p90
      %p92 = scmp.ne.s32.totalorder %s81, %s82
      %p93 = scmp.eq.s32.totalorder %s31, 0
      %p94 = por %p92, %p93
      %p95 = scmp.ne.s32.totalorder %s81, %s82
      %p96 = scmp.eq.s32.totalorder %s32, 1
      %p97 = por %p95, %p96
      %p99 = scmp.ne.s32.totalorder %s82, %s98
      %p100 = scmp.eq.s32.totalorder %s32, 0
      %p101 = por %p99, %p100
      %s102 = ssub.s32 %s26, %s33
      %p103 = scmp.eq.s32.totalorder %s102, 0
      %s105 = sadd.s32 %s104, 1
      %s106 = scalar_select %p103, %s104, %s105
      %p109 = pneg %p103
      %p110 = scmp.eq.s32.totalorder %s26, 1
      %p111 = por %p109, %p110
      %p112 = scmp.ne.s32.totalorder %s104, %s107
      %p113 = scmp.eq.s32.totalorder %s26, 0
      %p114 = por %p112, %p113
      %p115 = scmp.ne.s32.totalorder %s104, %s107
      %p116 = scmp.eq.s32.totalorder %s31, 1
      %p117 = por %p115, %p116
      %p118 = scmp.ne.s32.totalorder %s107, %s108
      %p119 = scmp.eq.s32.totalorder %s31, 0
      %p120 = por %p118, %p119
      %p121 = scmp.ne.s32.totalorder %s107, %s108
      %p122 = scmp.eq.s32.totalorder %s32, 1
      %p123 = por %p121, %p122
      %p125 = scmp.ne.s32.totalorder %s108, %s124
      %p126 = scmp.eq.s32.totalorder %s32, 0
      %p127 = por %p125, %p126
      %s128 = ssub.s32 %s26, %s33
      %p129 = scmp.eq.s32.totalorder %s128, 0
      %s131 = sadd.s32 %s130, 1
      %s132 = scalar_select %p129, %s130, %s131
      %p135 = pneg %p129
      %p136 = scmp.eq.s32.totalorder %s26, 1
      %p137 = por %p135, %p136
      %p138 = scmp.ne.s32.totalorder %s130, %s133
      %p139 = scmp.eq.s32.totalorder %s26, 0
      %p140 = por %p138, %p139
      %p141 = scmp.ne.s32.totalorder %s130, %s133
      %p142 = scmp.eq.s32.totalorder %s31, 1
      %p143 = por %p141, %p142
      %p144 = scmp.ne.s32.totalorder %s133, %s134
      %p145 = scmp.eq.s32.totalorder %s31, 0
      %p146 = por %p144, %p145
      %p147 = scmp.ne.s32.totalorder %s133, %s134
      %p148 = scmp.eq.s32.totalorder %s32, 1
      %p149 = por %p147, %p148
      %p151 = scmp.ne.s32.totalorder %s134, %s150
      %p152 = scmp.eq.s32.totalorder %s32, 0
      %p153 = por %p151, %p152
      %s154 = ssub.s32 %s26, %s33
      %p155 = scmp.eq.s32.totalorder %s154, 0
      %s157 = sadd.s32 %s156, 1
      %s158 = scalar_select %p155, %s156, %s157
      %p161 = pneg %p155
      %p162 = scmp.eq.s32.totalorder %s26, 1
      %p163 = por %p161, %p162
      %p164 = scmp.ne.s32.totalorder %s156, %s159
      %p165 = scmp.eq.s32.totalorder %s26, 0
      %p166 = por %p164, %p165
      %p167 = scmp.ne.s32.totalorder %s156, %s159
      %p168 = scmp.eq.s32.totalorder %s31, 1
      %p169 = por %p167, %p168
      %p170 = scmp.ne.s32.totalorder %s159, %s160
      %p171 = scmp.eq.s32.totalorder %s31, 0
      %p172 = por %p170, %p171
      %p173 = scmp.ne.s32.totalorder %s159, %s160
      %p174 = scmp.eq.s32.totalorder %s32, 1
      %p175 = por %p173, %p174
      %p177 = scmp.ne.s32.totalorder %s160, %s176
      %p178 = scmp.eq.s32.totalorder %s32, 0
      %p179 = por %p177, %p178
      %s180 = ssub.s32 %s26, %s33
      %p181 = scmp.eq.s32.totalorder %s180, 0
      %s183 = sadd.s32 %s182, 1
      %s184 = scalar_select %p181, %s182, %s183
      %p187 = pneg %p181
      %p188 = scmp.eq.s32.totalorder %s26, 1
      %p189 = por %p187, %p188
      %p190 = scmp.ne.s32.totalorder %s182, %s185
      %p191 = scmp.eq.s32.totalorder %s26, 0
      %p192 = por %p190, %p191
      %p193 = scmp.ne.s32.totalorder %s182, %s185
      %p194 = scmp.eq.s32.totalorder %s31, 1
      %p195 = por %p193, %p194
      %p196 = scmp.ne.s32.totalorder %s185, %s186
      %p197 = scmp.eq.s32.totalorder %s31, 0
      %p198 = por %p196, %p197
      %p199 = scmp.ne.s32.totalorder %s185, %s186
      %p200 = scmp.eq.s32.totalorder %s32, 1
      %p201 = por %p199, %p200
      %p203 = scmp.ne.s32.totalorder %s186, %s202
      %p204 = scmp.eq.s32.totalorder %s32, 0
      %p205 = por %p203, %p204
      %s206 = ssub.s32 %s26, %s33
      %p207 = scmp.eq.s32.totalorder %s206, 0
      %s209 = sadd.s32 %s208, 1
      %s210 = scalar_select %p207, %s208, %s209
      %p213 = pneg %p207
      %p214 = scmp.eq.s32.totalorder %s26, 1
      %p215 = por %p213, %p214
      %p216 = scmp.ne.s32.totalorder %s208, %s211
      %p217 = scmp.eq.s32.totalorder %s26, 0
      %p218 = por %p216, %p217
      %p219 = scmp.ne.s32.totalorder %s208, %s211
      %p220 = scmp.eq.s32.totalorder %s31, 1
      %p221 = por %p219, %p220
      %p222 = scmp.ne.s32.totalorder %s211, %s212
      %p223 = scmp.eq.s32.totalorder %s31, 0
      %p224 = por %p222, %p223
      %p225 = scmp.ne.s32.totalorder %s211, %s212
      %p226 = scmp.eq.s32.totalorder %s32, 1
      %p227 = por %p225, %p226
      %p229 = scmp.ne.s32.totalorder %s212, %s228
      %p230 = scmp.eq.s32.totalorder %s32, 0
      %p231 = por %p229, %p230
      %s232 = ssub.s32 %s26, %s33
      %p233 = scmp.eq.s32.totalorder %s232, 0
      %s235 = sadd.s32 %s234, 1
      %s236 = scalar_select %p233, %s234, %s235
      %p239 = pneg %p233
      %p240 = scmp.eq.s32.totalorder %s26, 1
      %p241 = por %p239, %p240
      %p242 = scmp.ne.s32.totalorder %s234, %s237
      %p243 = scmp.eq.s32.totalorder %s26, 0
      %p244 = por %p242, %p243
      %p245 = scmp.ne.s32.totalorder %s234, %s237
      %p246 = scmp.eq.s32.totalorder %s31, 1
      %p247 = por %p245, %p246
      %p248 = scmp.ne.s32.totalorder %s237, %s238
      %p249 = scmp.eq.s32.totalorder %s31, 0
      %p250 = por %p248, %p249
      %p251 = scmp.ne.s32.totalorder %s237, %s238
      %p252 = scmp.eq.s32.totalorder %s32, 1
      %p253 = por %p251, %p252
      %p255 = scmp.ne.s32.totalorder %s238, %s254
      %p256 = scmp.eq.s32.totalorder %s32, 0
      %p257 = por %p255, %p256
      %s258 = ssub.s32 %s26, %s33
      %p259 = scmp.eq.s32.totalorder %s258, 0
      %s261 = sadd.s32 %s260, 1
      %s262 = scalar_select %p259, %s260, %s261
      %p265 = pneg %p259
      %p266 = scmp.eq.s32.totalorder %s26, 1
      %p267 = por %p265, %p266
      %p268 = scmp.ne.s32.totalorder %s260, %s263
      %p269 = scmp.eq.s32.totalorder %s26, 0
      %p270 = por %p268, %p269
      %p271 = scmp.ne.s32.totalorder %s260, %s263
      %p272 = scmp.eq.s32.totalorder %s31, 1
      %p273 = por %p271, %p272
      %p274 = scmp.ne.s32.totalorder %s263, %s264
      %p275 = scmp.eq.s32.totalorder %s31, 0
      %p276 = por %p274, %p275
      %p277 = scmp.ne.s32.totalorder %s263, %s264
      %p278 = scmp.eq.s32.totalorder %s32, 1
      %p279 = por %p277, %p278
      %p281 = scmp.ne.s32.totalorder %s264, %s280
      %p282 = scmp.eq.s32.totalorder %s32, 0
      %p283 = por %p281, %p282
      %s284 = ssub.s32 %s26, %s33
      %p285 = scmp.eq.s32.totalorder %s284, 0
      %s287 = sadd.s32 %s286, 1
      %s288 = scalar_select %p285, %s286, %s287
      %p291 = pneg %p285
      %p292 = scmp.eq.s32.totalorder %s26, 1
      %p293 = por %p291, %p292
      %p294 = scmp.ne.s32.totalorder %s286, %s289
      %p295 = scmp.eq.s32.totalorder %s26, 0
      %p296 = por %p294, %p295
      %p297 = scmp.ne.s32.totalorder %s286, %s289
      %p298 = scmp.eq.s32.totalorder %s31, 1
      %p299 = por %p297, %p298
      %p300 = scmp.ne.s32.totalorder %s289, %s290
      %p301 = scmp.eq.s32.totalorder %s31, 0
      %p302 = por %p300, %p301
      %p303 = scmp.ne.s32.totalorder %s289, %s290
      %p304 = scmp.eq.s32.totalorder %s32, 1
      %p305 = por %p303, %p304
      %p307 = scmp.ne.s32.totalorder %s290, %s306
      %p308 = scmp.eq.s32.totalorder %s32, 0
      %p309 = por %p307, %p308
      %s310 = ssub.s32 %s26, %s33
      %p311 = scmp.eq.s32.totalorder %s310, 0
      %s313 = sadd.s32 %s312, 1
      %s314 = scalar_select %p311, %s312, %s313
      %p317 = pneg %p311
      %p318 = scmp.eq.s32.totalorder %s26, 1
      %p319 = por %p317, %p318
      %p320 = scmp.ne.s32.totalorder %s312, %s315
      %p321 = scmp.eq.s32.totalorder %s26, 0
      %p322 = por %p320, %p321
      %p323 = scmp.ne.s32.totalorder %s312, %s315
      %p324 = scmp.eq.s32.totalorder %s31, 1
      %p325 = por %p323, %p324
      %p326 = scmp.ne.s32.totalorder %s315, %s316
      %p327 = scmp.eq.s32.totalorder %s31, 0
      %p328 = por %p326, %p327
      %p329 = scmp.ne.s32.totalorder %s315, %s316
      %p330 = scmp.eq.s32.totalorder %s32, 1
      %p331 = por %p329, %p330
      %p333 = scmp.ne.s32.totalorder %s316, %s332
      %p334 = scmp.eq.s32.totalorder %s32, 0
      %p335 = por %p333, %p334
      %p336 = scmp.le.s32.totalorder 1, %s26
      %p337 = scmp.lt.s32.totalorder %s26, 3
      %p338 = pnand %p336, %p337
      %p339 = pneg %p338
      // Predicated region
      $region9: #{tpu_custom_call.1} parent=5 // pred_check
        _
      $region10: #{tpu_custom_call.1} parent=5 // pred_check_branch
        %341 = sbr.rel (%p338) target = $region12
      $region11: #{tpu_custom_call.1} parent=5 // pred_region
        %s342 = ssub.s32 %s26, 1
        // Predicated region
        $region13: #{tpu_custom_call.1} parent=11 // pred_check
          %p343 = pneg %p47
        $region14: #{tpu_custom_call.1} parent=11 // pred_check_branch
          %345 = sbr.rel (%p343) target = $region16
        $region15: #{tpu_custom_call.1} parent=11 // pred_region
          %s347 = ssub.s32 128, 128
          %348 = vsyncadd [#allocation3], %s347
          %s350 = sshll.u32 [#allocation2], 4
          %s351 = int_to_ptr.vmem [resolvable:$true] %s350
          %353 = dma.hbm_to_vmem [thread:$0]  %s0, 128, %s351, [#allocation3]
        $region16: #{tpu_custom_call.1} parent=11 // pred_fallthru
          _
        // Predicated region
        $region17: #{tpu_custom_call.1} parent=11 // pred_check
          %p354 = pneg %p68
        $region18: #{tpu_custom_call.1} parent=11 // pred_check_branch
          %356 = sbr.rel (%p354) target = $region20
        $region19: #{tpu_custom_call.1} parent=11 // pred_region
          %s358 = ssub.s32 128, 128
          %359 = vsyncadd [#allocation6], %s358
          %s361 = sshll.u32 [#allocation5], 4
          %s362 = int_to_ptr.vmem [resolvable:$true] %s361
          %364 = dma.hbm_to_vmem [thread:$0]  %s1, 128, %s362, [#allocation6]
        $region20: #{tpu_custom_call.1} parent=11 // pred_fallthru
          _
      $region12: #{tpu_custom_call.1} parent=5 // pred_fallthru
        _
      %p365 = scmp.lt.s32.totalorder %s26, 2
      // Predicated region
      $region21: #{tpu_custom_call.1} parent=5 // pred_check
        %p366 = pneg %p365
      $region22: #{tpu_custom_call.1} parent=5 // pred_check_branch
        %368 = sbr.rel (%p366) target = $region24
      $region23: #{tpu_custom_call.1} parent=5 // pred_region
        // Predicated region
        $region25: #{tpu_custom_call.1} parent=23 // pred_check
          %p369 = pneg %p88
        $region26: #{tpu_custom_call.1} parent=23 // pred_check_branch
          %371 = sbr.rel (%p369) target = $region28
        $region27: #{tpu_custom_call.1} parent=23 // pred_region
          %s372 = sand.u32 %s26, 1
          %s373 = scalar_lea.sflag [#allocation3], %s372
          %s374 = sand.u32 %s78, 1
          %s375 = smul.addr %s374, 8
          %s376 = scalar_lea.vmem [#allocation7], %s375
          %s378 = ssub.s32 128, 128
          %379 = vsyncadd %s373, %s378
          %s380 = smul.addr %s26, 128
          %s381 = scalar_lea.hbm %s2, %s380
          %s383 = sshll.u32 %s376, 4
          %s384 = int_to_ptr.vmem [resolvable:$true] %s383
          %386 = dma.hbm_to_vmem [thread:$0]  %s381, 128, %s384, %s373
        $region28: #{tpu_custom_call.1} parent=23 // pred_fallthru
          _
        // Predicated region
        $region29: #{tpu_custom_call.1} parent=23 // pred_check
          %p387 = pneg %p114
        $region30: #{tpu_custom_call.1} parent=23 // pred_check_branch
          %389 = sbr.rel (%p387) target = $region32
        $region31: #{tpu_custom_call.1} parent=23 // pred_region
          %s390 = sand.u32 %s26, 1
          %s391 = scalar_lea.sflag [#allocation3], %s390
          %s392 = sand.u32 %s104, 1
          %s393 = smul.addr %s392, 512
          %s394 = scalar_lea.vmem [#allocation8], %s393
          %s395 = smul.u32 4, %s26
          %s397 = ssub.s32 8192, 8192
          %398 = vsyncadd %s391, %s397
          %s399 = smul.addr %s395, 64
          %s400 = scalar_lea.hbm %s3, %s399
          %s401 = sshll.u32 %s394, 4
          %s402 = int_to_ptr.vmem [resolvable:$true] %s401
          %407 = dma.hbm_to_vmem [thread:$0]  %s400, 8192, %s402, %s391, 512, 256, 16
        $region32: #{tpu_custom_call.1} parent=23 // pred_fallthru
          _
        // Predicated region
        $region33: #{tpu_custom_call.1} parent=23 // pred_check
          %p408 = pneg %p140
        $region34: #{tpu_custom_call.1} parent=23 // pred_check_branch
          %410 = sbr.rel (%p408) target = $region36
        $region35: #{tpu_custom_call.1} parent=23 // pred_region
          %s411 = smul.u32 4, %s26
          %p412 = scmp.lt.s32.totalorder %s411, 7
          %s413 = scalar_select %p412, %s411, 7
          %s414 = scalar_lea.vmem %s4, %s413
          %s415 = smul.u32 4, %s26
        $region36: #{tpu_custom_call.1} parent=23 // pred_fallthru
          _
        // Predicated region
        $region37: #{tpu_custom_call.1} parent=23 // pred_check
          %p416 = pneg %p166
        $region38: #{tpu_custom_call.1} parent=23 // pred_check_branch
          %418 = sbr.rel (%p416) target = $region40
        $region39: #{tpu_custom_call.1} parent=23 // pred_region
          %s419 = sand.u32 %s26, 1
          %s420 = scalar_lea.sflag [#allocation3], %s419
          %s421 = sand.u32 %s156, 1
          %s422 = smul.addr %s421, 512
          %s423 = scalar_lea.vmem [#allocation9], %s422
          %s424 = smul.u32 4, %s26
          %s426 = ssub.s32 8192, 8192
          %427 = vsyncadd %s420, %s426
          %s428 = smul.addr %s424, 64
          %s429 = scalar_lea.hbm %s5, %s428
          %s430 = sshll.u32 %s423, 4
          %s431 = int_to_ptr.vmem [resolvable:$true] %s430
          %436 = dma.hbm_to_vmem [thread:$0]  %s429, 8192, %s431, %s420, 512, 256, 16
        $region40: #{tpu_custom_call.1} parent=23 // pred_fallthru
          _
        // Predicated region
        $region41: #{tpu_custom_call.1} parent=23 // pred_check
          %p437 = pneg %p192
        $region42: #{tpu_custom_call.1} parent=23 // pred_check_branch
          %439 = sbr.rel (%p437) target = $region44
        $region43: #{tpu_custom_call.1} parent=23 // pred_region
          %s440 = smul.u32 4, %s26
          %p441 = scmp.lt.s32.totalorder %s440, 7
          %s442 = scalar_select %p441, %s440, 7
          %s443 = scalar_lea.vmem %s6, %s442
          %s444 = smul.u32 4, %s26
        $region44: #{tpu_custom_call.1} parent=23 // pred_fallthru
          _
        // Predicated region
        $region45: #{tpu_custom_call.1} parent=23 // pred_check
          %p445 = pneg %p218
        $region46: #{tpu_custom_call.1} parent=23 // pred_check_branch
          %447 = sbr.rel (%p445) target = $region48
        $region47: #{tpu_custom_call.1} parent=23 // pred_region
          %s448 = smul.u32 4, %s26
          %p449 = scmp.lt.s32.totalorder %s448, 7
          %s450 = scalar_select %p449, %s448, 7
          %s451 = scalar_lea.vmem %s7, %s450
          %s452 = smul.u32 4, %s26
        $region48: #{tpu_custom_call.1} parent=23 // pred_fallthru
          _
        // Predicated region
        $region49: #{tpu_custom_call.1} parent=23 // pred_check
          %p453 = pneg %p244
        $region50: #{tpu_custom_call.1} parent=23 // pred_check_branch
          %455 = sbr.rel (%p453) target = $region52
        $region51: #{tpu_custom_call.1} parent=23 // pred_region
          %s456 = sand.u32 %s26, 1
          %s457 = scalar_lea.sflag [#allocation3], %s456
          %s458 = sand.u32 %s234, 1
          %s459 = smul.addr %s458, 4
          %s460 = scalar_lea.vmem [#allocation10], %s459
          %s461 = smul.u32 4, %s26
          %s463 = ssub.s32 64, 64
          %464 = vsyncadd %s457, %s463
          %s465 = smul.addr %s461, 16
          %s466 = scalar_lea.hbm %s8, %s465
          %s468 = sshll.u32 %s460, 4
          %s469 = int_to_ptr.vmem [resolvable:$true] %s468
          %471 = dma.hbm_to_vmem [thread:$0]  %s466, 64, %s469, %s457
        $region52: #{tpu_custom_call.1} parent=23 // pred_fallthru
          _
        // Predicated region
        $region53: #{tpu_custom_call.1} parent=23 // pred_check
          %p472 = pneg %p270
        $region54: #{tpu_custom_call.1} parent=23 // pred_check_branch
          %474 = sbr.rel (%p472) target = $region56
        $region55: #{tpu_custom_call.1} parent=23 // pred_region
          %s475 = smul.u32 4, %s26
          %p476 = scmp.lt.s32.totalorder %s475, 7
          %s477 = scalar_select %p476, %s475, 7
          %s478 = scalar_lea.vmem %s9, %s477
          %s479 = smul.u32 4, %s26
        $region56: #{tpu_custom_call.1} parent=23 // pred_fallthru
          _
      $region24: #{tpu_custom_call.1} parent=5 // pred_fallthru
        _
      %p480 = scmp.le.s32.totalorder 1, %s26
      %p481 = scmp.lt.s32.totalorder %s26, 3
      %p482 = pnand %p480, %p481
      %p483 = pneg %p482
      // Predicated region
      $region57: #{tpu_custom_call.1} parent=5 // pred_check
        _
      $region58: #{tpu_custom_call.1} parent=5 // pred_check_branch
        %485 = sbr.rel (%p482) target = $region60
      $region59: #{tpu_custom_call.1} parent=5 // pred_region
        %s486 = ssub.s32 %s26, 1
        // Predicated region
        $region61: #{tpu_custom_call.1} parent=59 // pred_check
          %p487 = pneg %p47
        $region62: #{tpu_custom_call.1} parent=59 // pred_check_branch
          %489 = sbr.rel (%p487) target = $region64
        $region63: #{tpu_custom_call.1} parent=59 // pred_region
          %490 = dma.done [#allocation3], 128
        $region64: #{tpu_custom_call.1} parent=59 // pred_fallthru
          _
        // Predicated region
        $region65: #{tpu_custom_call.1} parent=59 // pred_check
          %p491 = pneg %p68
        $region66: #{tpu_custom_call.1} parent=59 // pred_check_branch
          %493 = sbr.rel (%p491) target = $region68
        $region67: #{tpu_custom_call.1} parent=59 // pred_region
          %494 = dma.done [#allocation6], 128
        $region68: #{tpu_custom_call.1} parent=59 // pred_fallthru
          _
        %s495 = sand.u32 %s31, 1
        %s496 = scalar_lea.sflag [#allocation3], %s495
        %s497 = sand.u32 %s81, 1
        %s498 = smul.addr %s497, 8
        %s499 = scalar_lea.vmem [#allocation7], %s498
        // Predicated region
        $region69: #{tpu_custom_call.1} parent=59 // pred_check
          %p500 = pneg %p94
        $region70: #{tpu_custom_call.1} parent=59 // pred_check_branch
          %502 = sbr.rel (%p500) target = $region72
        $region71: #{tpu_custom_call.1} parent=59 // pred_region
          %503 = dma.done %s496, 128
        $region72: #{tpu_custom_call.1} parent=59 // pred_fallthru
          _
        %s504 = sand.u32 %s31, 1
        %s505 = scalar_lea.sflag [#allocation3], %s504
        %s506 = sand.u32 %s107, 1
        %s507 = smul.addr %s506, 512
        %s508 = scalar_lea.vmem [#allocation8], %s507
        // Predicated region
        $region73: #{tpu_custom_call.1} parent=59 // pred_check
          %p509 = pneg %p120
        $region74: #{tpu_custom_call.1} parent=59 // pred_check_branch
          %511 = sbr.rel (%p509) target = $region76
        $region75: #{tpu_custom_call.1} parent=59 // pred_region
          %512 = dma.done %s505, 8192
        $region76: #{tpu_custom_call.1} parent=59 // pred_fallthru
          _
        %s513 = sand.u32 %s31, 1
        %s514 = scalar_lea.sflag [#allocation3], %s513
        %s515 = sand.u32 %s159, 1
        %s516 = smul.addr %s515, 512
        %s517 = scalar_lea.vmem [#allocation9], %s516
        // Predicated region
        $region77: #{tpu_custom_call.1} parent=59 // pred_check
          %p518 = pneg %p172
        $region78: #{tpu_custom_call.1} parent=59 // pred_check_branch
          %520 = sbr.rel (%p518) target = $region80
        $region79: #{tpu_custom_call.1} parent=59 // pred_region
          %521 = dma.done %s514, 8192
        $region80: #{tpu_custom_call.1} parent=59 // pred_fallthru
          _
        %s522 = sand.u32 %s31, 1
        %s523 = scalar_lea.sflag [#allocation3], %s522
        %s524 = sand.u32 %s237, 1
        %s525 = smul.addr %s524, 4
        %s526 = scalar_lea.vmem [#allocation10], %s525
        // Predicated region
        $region81: #{tpu_custom_call.1} parent=59 // pred_check
          %p527 = pneg %p250
        $region82: #{tpu_custom_call.1} parent=59 // pred_check_branch
          %529 = sbr.rel (%p527) target = $region84
        $region83: #{tpu_custom_call.1} parent=59 // pred_region
          %530 = dma.done %s523, 64
        $region84: #{tpu_custom_call.1} parent=59 // pred_fallthru
          _
        %p531 = pneg %p47
        %p532 = pneg %p44
        %p533 = pneg %p68
        %p534 = pneg %p65
        %s535 = sand.u32 %s31, 1
        %s536 = scalar_lea.sflag [#allocation3], %s535
        %s537 = sand.u32 %s81, 1
        %s538 = smul.addr %s537, 8
        %s539 = scalar_lea.vmem [#allocation7], %s538
        %p540 = pneg %p94
        %p541 = pneg %p91
        %s542 = sand.u32 %s31, 1
        %s543 = scalar_lea.sflag [#allocation3], %s542
        %s544 = sand.u32 %s107, 1
        %s545 = smul.addr %s544, 512
        %s546 = scalar_lea.vmem [#allocation8], %s545
        %p547 = pneg %p120
        %p548 = pneg %p117
        %s549 = smul.u32 4, %s31
        %p550 = scmp.lt.s32.totalorder %s549, 7
        %s551 = scalar_select %p550, %s549, 7
        %s552 = scalar_lea.vmem %s4, %s551
        %p553 = pneg %p146
        %p554 = pneg %p143
        %s555 = sand.u32 %s31, 1
        %s556 = scalar_lea.sflag [#allocation3], %s555
        %s557 = sand.u32 %s159, 1
        %s558 = smul.addr %s557, 512
        %s559 = scalar_lea.vmem [#allocation9], %s558
        %p560 = pneg %p172
        %p561 = pneg %p169
        %s562 = smul.u32 4, %s31
        %p563 = scmp.lt.s32.totalorder %s562, 7
        %s564 = scalar_select %p563, %s562, 7
        %s565 = scalar_lea.vmem %s6, %s564
        %p566 = pneg %p198
        %p567 = pneg %p195
        %s568 = smul.u32 4, %s31
        %p569 = scmp.lt.s32.totalorder %s568, 7
        %s570 = scalar_select %p569, %s568, 7
        %s571 = scalar_lea.vmem %s7, %s570
        %p572 = pneg %p224
        %p573 = pneg %p221
        %s574 = sand.u32 %s31, 1
        %s575 = scalar_lea.sflag [#allocation3], %s574
        %s576 = sand.u32 %s237, 1
        %s577 = smul.addr %s576, 4
        %s578 = scalar_lea.vmem [#allocation10], %s577
        %p579 = pneg %p250
        %p580 = pneg %p247
        %s581 = smul.u32 4, %s31
        %p582 = scmp.lt.s32.totalorder %s581, 7
        %s583 = scalar_select %p582, %s581, 7
        %s584 = scalar_lea.vmem %s9, %s583
        %p585 = pneg %p276
        %p586 = pneg %p273
        %p587 = pneg %p302
        %p588 = pneg %p299
        %s589 = sand.u32 %s289, 1
        %s590 = scalar_lea.sflag [#allocation4], %s589
        %s591 = sand.u32 %s289, 1
        %s592 = smul.addr %s591, 8
        %s593 = scalar_lea.vmem [#allocation11], %s592
        %p594 = pneg %p328
        %p595 = pneg %p325
        %s596 = sand.u32 %s315, 1
        %s597 = scalar_lea.sflag [#allocation13], %s596
        %s598 = sand.u32 %s315, 1
        %s599 = smul.addr %s598, 8
        %s600 = scalar_lea.vmem [#allocation12], %s599
        %s601 = smul.u32 4, %s31
        %s602 = smul.u32 4, %s31
        %p603 = scmp.lt.s32.totalorder %s602, 7
        %s604 = scalar_select %p603, %s602, 7
        %s605 = scalar_lea.vmem %s4, %s604
        %s606 = smul.u32 4, %s31
        %s607 = smul.u32 4, %s31
        %s608 = smul.u32 4, %s31
        %p609 = scmp.lt.s32.totalorder %s608, 7
        %s610 = scalar_select %p609, %s608, 7
        %s611 = scalar_lea.vmem %s6, %s610
        %s612 = smul.u32 4, %s31
        %s613 = smul.u32 4, %s31
        %p614 = scmp.lt.s32.totalorder %s613, 7
        %s615 = scalar_select %p614, %s613, 7
        %s616 = scalar_lea.vmem %s7, %s615
        %s617 = smul.u32 4, %s31
        %s618 = smul.u32 4, %s31
        %s619 = smul.u32 4, %s31
        %p620 = scmp.lt.s32.totalorder %s619, 7
        %s621 = scalar_select %p620, %s619, 7
        %s622 = scalar_lea.vmem %s9, %s621
        %s623 = smul.u32 4, %s31
        %v624 = vld [vmem:[#allocation2] sm:$0xff]
        %v625 = vld [vmem:[%s508] sm:$0xff]
        %v626 = vld [vmem:[%s508 + $0x8] sm:$0xff]
        %v627 = vld [vmem:[%s508 + $0x10] sm:$0xff]
        %v628 = vld [vmem:[%s508 + $0x18] sm:$0xff]
        %v629 = vld [vmem:[%s508 + $0x20] sm:$0xff]
        %v630 = vld [vmem:[%s508 + $0x28] sm:$0xff]
        %v631 = vld [vmem:[%s508 + $0x30] sm:$0xff]
        %v632 = vld [vmem:[%s508 + $0x38] sm:$0xff]
        %v633 = vld [vmem:[%s508 + $0x40] sm:$0xff]
        %v634 = vld [vmem:[%s508 + $0x48] sm:$0xff]
        %v635 = vld [vmem:[%s508 + $0x50] sm:$0xff]
        %v636 = vld [vmem:[%s508 + $0x58] sm:$0xff]
        %v637 = vld [vmem:[%s508 + $0x60] sm:$0xff]
        %v638 = vld [vmem:[%s508 + $0x68] sm:$0xff]
        %v639 = vld [vmem:[%s508 + $0x70] sm:$0xff]
        %v640 = vld [vmem:[%s508 + $0x78] sm:$0xff]
        %v641 = vld [vmem:[%s508 + $0x80] sm:$0xff]
        %v642 = vld [vmem:[%s508 + $0x88] sm:$0xff]
        %v643 = vld [vmem:[%s508 + $0x90] sm:$0xff]
        %v644 = vld [vmem:[%s508 + $0x98] sm:$0xff]
        %v645 = vld [vmem:[%s508 + $0xa0] sm:$0xff]
        %v646 = vld [vmem:[%s508 + $0xa8] sm:$0xff]
        %v647 = vld [vmem:[%s508 + $0xb0] sm:$0xff]
        %v648 = vld [vmem:[%s508 + $0xb8] sm:$0xff]
        %v649 = vld [vmem:[%s508 + $0xc0] sm:$0xff]
        %v650 = vld [vmem:[%s508 + $0xc8] sm:$0xff]
        %v651 = vld [vmem:[%s508 + $0xd0] sm:$0xff]
        %v652 = vld [vmem:[%s508 + $0xd8] sm:$0xff]
        %v653 = vld [vmem:[%s508 + $0xe0] sm:$0xff]
        %v654 = vld [vmem:[%s508 + $0xe8] sm:$0xff]
        %v655 = vld [vmem:[%s508 + $0xf0] sm:$0xff]
        %v656 = vld [vmem:[%s508 + $0xf8] sm:$0xff]
        %v657 = vld [vmem:[%s508 + $0x100] sm:$0xff]
        %v658 = vld [vmem:[%s508 + $0x108] sm:$0xff]
        %v659 = vld [vmem:[%s508 + $0x110] sm:$0xff]
        %v660 = vld [vmem:[%s508 + $0x118] sm:$0xff]
        %v661 = vld [vmem:[%s508 + $0x120] sm:$0xff]
        %v662 = vld [vmem:[%s508 + $0x128] sm:$0xff]
        %v663 = vld [vmem:[%s508 + $0x130] sm:$0xff]
        %v664 = vld [vmem:[%s508 + $0x138] sm:$0xff]
        %v665 = vld [vmem:[%s508 + $0x140] sm:$0xff]
        %v666 = vld [vmem:[%s508 + $0x148] sm:$0xff]
        %v667 = vld [vmem:[%s508 + $0x150] sm:$0xff]
        %v668 = vld [vmem:[%s508 + $0x158] sm:$0xff]
        %v669 = vld [vmem:[%s508 + $0x160] sm:$0xff]
        %v670 = vld [vmem:[%s508 + $0x168] sm:$0xff]
        %v671 = vld [vmem:[%s508 + $0x170] sm:$0xff]
        %v672 = vld [vmem:[%s508 + $0x178] sm:$0xff]
        %v673 = vld [vmem:[%s508 + $0x180] sm:$0xff]
        %v674 = vld [vmem:[%s508 + $0x188] sm:$0xff]
        %v675 = vld [vmem:[%s508 + $0x190] sm:$0xff]
        %v676 = vld [vmem:[%s508 + $0x198] sm:$0xff]
        %v677 = vld [vmem:[%s508 + $0x1a0] sm:$0xff]
        %v678 = vld [vmem:[%s508 + $0x1a8] sm:$0xff]
        %v679 = vld [vmem:[%s508 + $0x1b0] sm:$0xff]
        %v680 = vld [vmem:[%s508 + $0x1b8] sm:$0xff]
        %v681 = vld [vmem:[%s508 + $0x1c0] sm:$0xff]
        %v682 = vld [vmem:[%s508 + $0x1c8] sm:$0xff]
        %v683 = vld [vmem:[%s508 + $0x1d0] sm:$0xff]
        %v684 = vld [vmem:[%s508 + $0x1d8] sm:$0xff]
        %v685 = vld [vmem:[%s508 + $0x1e0] sm:$0xff]
        %v686 = vld [vmem:[%s508 + $0x1e8] sm:$0xff]
        %v687 = vld [vmem:[%s508 + $0x1f0] sm:$0xff]
        %v688 = vld [vmem:[%s508 + $0x1f8] sm:$0xff]
        %v689 = vld [vmem:[%s605] sm:$0xf]
        %v691 = vlaneseq
        %v692 = vshrl.u32 %v691, 7
        %v693 = vsub.s32 0, %v692
        %v694 = vrot.slane %v689, %v693
        %v695 = vlaneseq
        %v696 = vshrl.u32 %v695, 7
        %v697 = vsub.s32 1, %v696
        %v698 = vrot.slane %v689, %v697
        %v699 = vlaneseq
        %v700 = vshrl.u32 %v699, 7
        %v701 = vsub.s32 2, %v700
        %v702 = vrot.slane %v689, %v701
        %v703 = vlaneseq
        %v704 = vshrl.u32 %v703, 7
        %v705 = vsub.s32 3, %v704
        %v706 = vrot.slane %v689, %v705
        %v712 = vunpack.c.l.b16 %v624
        %v713 = vunpack.c.h.b16 %v624
        %v714 = vpack.c.b16 %v712, %v712
        %v715 = vpack.c.b16 %v713, %v713
        %v782 = vunpack.c.l.b16 %v625
        %v783 = vunpack.c.h.b16 %v625
        %v784 = vunpack.c.l.b16 %v626
        %v785 = vunpack.c.h.b16 %v626
        %v786 = vunpack.c.l.b16 %v627
        %v787 = vunpack.c.h.b16 %v627
        %v788 = vunpack.c.l.b16 %v628
        %v789 = vunpack.c.h.b16 %v628
        %v790 = vunpack.c.l.b16 %v629
        %v791 = vunpack.c.h.b16 %v629
        %v792 = vunpack.c.l.b16 %v630
        %v793 = vunpack.c.h.b16 %v630
        %v794 = vunpack.c.l.b16 %v631
        %v795 = vunpack.c.h.b16 %v631
        %v796 = vunpack.c.l.b16 %v632
        %v797 = vunpack.c.h.b16 %v632
        %v798 = vunpack.c.l.b16 %v633
        %v799 = vunpack.c.h.b16 %v633
        %v800 = vunpack.c.l.b16 %v634
        %v801 = vunpack.c.h.b16 %v634
        %v802 = vunpack.c.l.b16 %v635
        %v803 = vunpack.c.h.b16 %v635
        %v804 = vunpack.c.l.b16 %v636
        %v805 = vunpack.c.h.b16 %v636
        %v806 = vunpack.c.l.b16 %v637
        %v807 = vunpack.c.h.b16 %v637
        %v808 = vunpack.c.l.b16 %v638
        %v809 = vunpack.c.h.b16 %v638
        %v810 = vunpack.c.l.b16 %v639
        %v811 = vunpack.c.h.b16 %v639
        %v812 = vunpack.c.l.b16 %v640
        %v813 = vunpack.c.h.b16 %v640
        %v814 = vunpack.c.l.b16 %v641
        %v815 = vunpack.c.h.b16 %v641
        %v816 = vunpack.c.l.b16 %v642
        %v817 = vunpack.c.h.b16 %v642
        %v818 = vunpack.c.l.b16 %v643
        %v819 = vunpack.c.h.b16 %v643
        %v820 = vunpack.c.l.b16 %v644
        %v821 = vunpack.c.h.b16 %v644
        %v822 = vunpack.c.l.b16 %v645
        %v823 = vunpack.c.h.b16 %v645
        %v824 = vunpack.c.l.b16 %v646
        %v825 = vunpack.c.h.b16 %v646
        %v826 = vunpack.c.l.b16 %v647
        %v827 = vunpack.c.h.b16 %v647
        %v828 = vunpack.c.l.b16 %v648
        %v829 = vunpack.c.h.b16 %v648
        %v830 = vunpack.c.l.b16 %v649
        %v831 = vunpack.c.h.b16 %v649
        %v832 = vunpack.c.l.b16 %v650
        %v833 = vunpack.c.h.b16 %v650
        %v834 = vunpack.c.l.b16 %v651
        %v835 = vunpack.c.h.b16 %v651
        %v836 = vunpack.c.l.b16 %v652
        %v837 = vunpack.c.h.b16 %v652
        %v838 = vunpack.c.l.b16 %v653
        %v839 = vunpack.c.h.b16 %v653
        %v840 = vunpack.c.l.b16 %v654
        %v841 = vunpack.c.h.b16 %v654
        %v842 = vunpack.c.l.b16 %v655
        %v843 = vunpack.c.h.b16 %v655
        %v844 = vunpack.c.l.b16 %v656
        %v845 = vunpack.c.h.b16 %v656
        %v846 = vunpack.c.l.b16 %v657
        %v847 = vunpack.c.h.b16 %v657
        %v848 = vunpack.c.l.b16 %v658
        %v849 = vunpack.c.h.b16 %v658
        %v850 = vunpack.c.l.b16 %v659
        %v851 = vunpack.c.h.b16 %v659
        %v852 = vunpack.c.l.b16 %v660
        %v853 = vunpack.c.h.b16 %v660
        %v854 = vunpack.c.l.b16 %v661
        %v855 = vunpack.c.h.b16 %v661
        %v856 = vunpack.c.l.b16 %v662
        %v857 = vunpack.c.h.b16 %v662
        %v858 = vunpack.c.l.b16 %v663
        %v859 = vunpack.c.h.b16 %v663
        %v860 = vunpack.c.l.b16 %v664
        %v861 = vunpack.c.h.b16 %v664
        %v862 = vunpack.c.l.b16 %v665
        %v863 = vunpack.c.h.b16 %v665
        %v864 = vunpack.c.l.b16 %v666
        %v865 = vunpack.c.h.b16 %v666
        %v866 = vunpack.c.l.b16 %v667
        %v867 = vunpack.c.h.b16 %v667
        %v868 = vunpack.c.l.b16 %v668
        %v869 = vunpack.c.h.b16 %v668
        %v870 = vunpack.c.l.b16 %v669
        %v871 = vunpack.c.h.b16 %v669
        %v872 = vunpack.c.l.b16 %v670
        %v873 = vunpack.c.h.b16 %v670
        %v874 = vunpack.c.l.b16 %v671
        %v875 = vunpack.c.h.b16 %v671
        %v876 = vunpack.c.l.b16 %v672
        %v877 = vunpack.c.h.b16 %v672
        %v878 = vunpack.c.l.b16 %v673
        %v879 = vunpack.c.h.b16 %v673
        %v880 = vunpack.c.l.b16 %v674
        %v881 = vunpack.c.h.b16 %v674
        %v882 = vunpack.c.l.b16 %v675
        %v883 = vunpack.c.h.b16 %v675
        %v884 = vunpack.c.l.b16 %v676
        %v885 = vunpack.c.h.b16 %v676
        %v886 = vunpack.c.l.b16 %v677
        %v887 = vunpack.c.h.b16 %v677
        %v888 = vunpack.c.l.b16 %v678
        %v889 = vunpack.c.h.b16 %v678
        %v890 = vunpack.c.l.b16 %v679
        %v891 = vunpack.c.h.b16 %v679
        %v892 = vunpack.c.l.b16 %v680
        %v893 = vunpack.c.h.b16 %v680
        %v894 = vunpack.c.l.b16 %v681
        %v895 = vunpack.c.h.b16 %v681
        %v896 = vunpack.c.l.b16 %v682
        %v897 = vunpack.c.h.b16 %v682
        %v898 = vunpack.c.l.b16 %v683
        %v899 = vunpack.c.h.b16 %v683
        %v900 = vunpack.c.l.b16 %v684
        %v901 = vunpack.c.h.b16 %v684
        %v902 = vunpack.c.l.b16 %v685
        %v903 = vunpack.c.h.b16 %v685
        %v904 = vunpack.c.l.b16 %v686
        %v905 = vunpack.c.h.b16 %v686
        %v906 = vunpack.c.l.b16 %v687
        %v907 = vunpack.c.h.b16 %v687
        %v908 = vunpack.c.l.b16 %v688
        %v909 = vunpack.c.h.b16 %v688
        %v910 = vpack.c.b16 %v786, %v782
        %v911 = vpack.c.b16 %v787, %v783
        %v912 = vpack.c.b16 %v788, %v784
        %v913 = vpack.c.b16 %v789, %v785
        %v914 = vpack.c.b16 %v794, %v790
        %v915 = vpack.c.b16 %v795, %v791
        %v916 = vpack.c.b16 %v796, %v792
        %v917 = vpack.c.b16 %v797, %v793
        %v918 = vpack.c.b16 %v802, %v798
        %v919 = vpack.c.b16 %v803, %v799
        %v920 = vpack.c.b16 %v804, %v800
        %v921 = vpack.c.b16 %v805, %v801
        %v922 = vpack.c.b16 %v810, %v806
        %v923 = vpack.c.b16 %v811, %v807
        %v924 = vpack.c.b16 %v812, %v808
        %v925 = vpack.c.b16 %v813, %v809
        %v926 = vpack.c.b16 %v818, %v814
        %v927 = vpack.c.b16 %v819, %v815
        %v928 = vpack.c.b16 %v820, %v816
        %v929 = vpack.c.b16 %v821, %v817
        %v930 = vpack.c.b16 %v826, %v822
        %v931 = vpack.c.b16 %v827, %v823
        %v932 = vpack.c.b16 %v828, %v824
        %v933 = vpack.c.b16 %v829, %v825
        %v934 = vpack.c.b16 %v834, %v830
        %v935 = vpack.c.b16 %v835, %v831
        %v936 = vpack.c.b16 %v836, %v832
        %v937 = vpack.c.b16 %v837, %v833
        %v938 = vpack.c.b16 %v842, %v838
        %v939 = vpack.c.b16 %v843, %v839
        %v940 = vpack.c.b16 %v844, %v840
        %v941 = vpack.c.b16 %v845, %v841
        %v942 = vpack.c.b16 %v850, %v846
        %v943 = vpack.c.b16 %v851, %v847
        %v944 = vpack.c.b16 %v852, %v848
        %v945 = vpack.c.b16 %v853, %v849
        %v946 = vpack.c.b16 %v858, %v854
        %v947 = vpack.c.b16 %v859, %v855
        %v948 = vpack.c.b16 %v860, %v856
        %v949 = vpack.c.b16 %v861, %v857
        %v950 = vpack.c.b16 %v866, %v862
        %v951 = vpack.c.b16 %v867, %v863
        %v952 = vpack.c.b16 %v868, %v864
        %v953 = vpack.c.b16 %v869, %v865
        %v954 = vpack.c.b16 %v874, %v870
        %v955 = vpack.c.b16 %v875, %v871
        %v956 = vpack.c.b16 %v876, %v872
        %v957 = vpack.c.b16 %v877, %v873
        %v958 = vpack.c.b16 %v882, %v878
        %v959 = vpack.c.b16 %v883, %v879
        %v960 = vpack.c.b16 %v884, %v880
        %v961 = vpack.c.b16 %v885, %v881
        %v962 = vpack.c.b16 %v890, %v886
        %v963 = vpack.c.b16 %v891, %v887
        %v964 = vpack.c.b16 %v892, %v888
        %v965 = vpack.c.b16 %v893, %v889
        %v966 = vpack.c.b16 %v898, %v894
        %v967 = vpack.c.b16 %v899, %v895
        %v968 = vpack.c.b16 %v900, %v896
        %v969 = vpack.c.b16 %v901, %v897
        %v970 = vpack.c.b16 %v906, %v902
        %v971 = vpack.c.b16 %v907, %v903
        %v972 = vpack.c.b16 %v908, %v904
        %v973 = vpack.c.b16 %v909, %v905
        %1038 = vmatprep.subr.bf16.mxu0 %v911
        %1039 = vmatpush1.bf16.msra.mxu0 %v910
        %1040 = vmatprep.subr.bf16.mxu0 %v915
        %1041 = vmatpush1.bf16.msra.mxu0 %v914
        %1042 = vmatprep.subr.bf16.mxu0 %v919
        %1043 = vmatpush1.bf16.msra.mxu0 %v918
        %1044 = vmatprep.subr.bf16.mxu0 %v923
        %1045 = vmatpush1.bf16.msra.mxu0 %v922
        %1046 = vmatprep.subr.bf16.mxu0 %v927
        %1047 = vmatpush1.bf16.msra.mxu0 %v926
        %1048 = vmatprep.subr.bf16.mxu0 %v931
        %1049 = vmatpush1.bf16.msra.mxu0 %v930
        %1050 = vmatprep.subr.bf16.mxu0 %v935
        %1051 = vmatpush1.bf16.msra.mxu0 %v934
        %1052 = vmatprep.subr.bf16.mxu0 %v939
        %1053 = vmatpush1.bf16.msra.mxu0 %v938
        %1054 = vmatprep.subr.bf16.mxu0 %v943
        %1055 = vmatpush1.bf16.msra.mxu0 %v942
        %1056 = vmatprep.subr.bf16.mxu0 %v947
        %1057 = vmatpush1.bf16.msra.mxu0 %v946
        %1058 = vmatprep.subr.bf16.mxu0 %v951
        %1059 = vmatpush1.bf16.msra.mxu0 %v950
        %1060 = vmatprep.subr.bf16.mxu0 %v955
        %1061 = vmatpush1.bf16.msra.mxu0 %v954
        %1062 = vmatprep.subr.bf16.mxu0 %v959
        %1063 = vmatpush1.bf16.msra.mxu0 %v958
        %1064 = vmatprep.subr.bf16.mxu0 %v963
        %1065 = vmatpush1.bf16.msra.mxu0 %v962
        %1066 = vmatprep.subr.bf16.mxu0 %v967
        %1067 = vmatpush1.bf16.msra.mxu0 %v966
        %1068 = vmatprep.subr.bf16.mxu0 %v971
        %1069 = vmatpush1.bf16.msra.mxu0 %v970
        %1070 = vmatprep.mubr.bf16.mxu0 %v715
        %1071 = vmatmul.mubr.bf16.gmra.mrb[0].mxu0 %v714
        %v1072 = vpop.f32.mrb[0].mxu0
        %v1073 = vadd.f32 %v694, %v1072
        %v1074 = vpop.f32.mrb[0].mxu0
        %v1075 = vadd.f32 %v698, %v1074
        %v1076 = vpop.f32.mrb[0].mxu0
        %v1077 = vpop.f32.mrb[0].mxu0
        %1078 = vdwg.mxu0
        %1079 = vmatprep.subr.bf16.mxu0 %v913
        %1080 = vmatpush1.bf16.msra.mxu0 %v912
        %1081 = vmatprep.subr.bf16.mxu0 %v917
        %1082 = vmatpush1.bf16.msra.mxu0 %v916
        %1083 = vmatprep.subr.bf16.mxu0 %v921
        %1084 = vmatpush1.bf16.msra.mxu0 %v920
        %1085 = vmatprep.subr.bf16.mxu0 %v925
        %1086 = vmatpush1.bf16.msra.mxu0 %v924
        %1087 = vmatprep.subr.bf16.mxu0 %v929
        %1088 = vmatpush1.bf16.msra.mxu0 %v928
        %1089 = vmatprep.subr.bf16.mxu0 %v933
        %1090 = vmatpush1.bf16.msra.mxu0 %v932
        %1091 = vmatprep.subr.bf16.mxu0 %v937
        %1092 = vmatpush1.bf16.msra.mxu0 %v936
        %1093 = vmatprep.subr.bf16.mxu0 %v941
        %1094 = vmatpush1.bf16.msra.mxu0 %v940
        %1095 = vmatprep.subr.bf16.mxu0 %v945
        %1096 = vmatpush1.bf16.msra.mxu0 %v944
        %1097 = vmatprep.subr.bf16.mxu0 %v949
        %1098 = vmatpush1.bf16.msra.mxu0 %v948
        %1099 = vmatprep.subr.bf16.mxu0 %v953
        %1100 = vmatpush1.bf16.msra.mxu0 %v952
        %1101 = vmatprep.subr.bf16.mxu0 %v957
        %1102 = vmatpush1.bf16.msra.mxu0 %v956
        %1103 = vmatprep.subr.bf16.mxu0 %v961
        %1104 = vmatpush1.bf16.msra.mxu0 %v960
        %1105 = vmatprep.subr.bf16.mxu0 %v965
        %1106 = vmatpush1.bf16.msra.mxu0 %v964
        %1107 = vmatprep.subr.bf16.mxu0 %v969
        %1108 = vmatpush1.bf16.msra.mxu0 %v968
        %1109 = vmatprep.subr.bf16.mxu0 %v973
        %1110 = vmatpush1.bf16.msra.mxu0 %v972
        %1111 = vmatprep.mubr.bf16.mxu0 %v715
        %1112 = vmatmul.mubr.bf16.gmra.mrb[0].mxu0 %v714
        %v1113 = vpop.f32.mrb[0].mxu0
        %v1114 = vadd.f32 %v702, %v1113
        %v1115 = vpop.f32.mrb[0].mxu0
        %v1116 = vadd.f32 %v706, %v1115
        %v1117 = vpop.f32.mrb[0].mxu0
        %v1118 = vpop.f32.mrb[0].mxu0
        %1119 = vdwg.mxu0
        %v1120 = vld [vmem:[#allocation5] sm:$0xff]
        %v1121 = vld [vmem:[%s517] sm:$0xff]
        %v1122 = vld [vmem:[%s517 + $0x8] sm:$0xff]
        %v1123 = vld [vmem:[%s517 + $0x10] sm:$0xff]
        %v1124 = vld [vmem:[%s517 + $0x18] sm:$0xff]
        %v1125 = vld [vmem:[%s517 + $0x20] sm:$0xff]
        %v1126 = vld [vmem:[%s517 + $0x28] sm:$0xff]
        %v1127 = vld [vmem:[%s517 + $0x30] sm:$0xff]
        %v1128 = vld [vmem:[%s517 + $0x38] sm:$0xff]
        %v1129 = vld [vmem:[%s517 + $0x40] sm:$0xff]
        %v1130 = vld [vmem:[%s517 + $0x48] sm:$0xff]
        %v1131 = vld [vmem:[%s517 + $0x50] sm:$0xff]
        %v1132 = vld [vmem:[%s517 + $0x58] sm:$0xff]
        %v1133 = vld [vmem:[%s517 + $0x60] sm:$0xff]
        %v1134 = vld [vmem:[%s517 + $0x68] sm:$0xff]
        %v1135 = vld [vmem:[%s517 + $0x70] sm:$0xff]
        %v1136 = vld [vmem:[%s517 + $0x78] sm:$0xff]
        %v1137 = vld [vmem:[%s517 + $0x80] sm:$0xff]
        %v1138 = vld [vmem:[%s517 + $0x88] sm:$0xff]
        %v1139 = vld [vmem:[%s517 + $0x90] sm:$0xff]
        %v1140 = vld [vmem:[%s517 + $0x98] sm:$0xff]
        %v1141 = vld [vmem:[%s517 + $0xa0] sm:$0xff]
        %v1142 = vld [vmem:[%s517 + $0xa8] sm:$0xff]
        %v1143 = vld [vmem:[%s517 + $0xb0] sm:$0xff]
        %v1144 = vld [vmem:[%s517 + $0xb8] sm:$0xff]
        %v1145 = vld [vmem:[%s517 + $0xc0] sm:$0xff]
        %v1146 = vld [vmem:[%s517 + $0xc8] sm:$0xff]
        %v1147 = vld [vmem:[%s517 + $0xd0] sm:$0xff]
        %v1148 = vld [vmem:[%s517 + $0xd8] sm:$0xff]
        %v1149 = vld [vmem:[%s517 + $0xe0] sm:$0xff]
        %v1150 = vld [vmem:[%s517 + $0xe8] sm:$0xff]
        %v1151 = vld [vmem:[%s517 + $0xf0] sm:$0xff]
        %v1152 = vld [vmem:[%s517 + $0xf8] sm:$0xff]
        %v1153 = vld [vmem:[%s517 + $0x100] sm:$0xff]
        %v1154 = vld [vmem:[%s517 + $0x108] sm:$0xff]
        %v1155 = vld [vmem:[%s517 + $0x110] sm:$0xff]
        %v1156 = vld [vmem:[%s517 + $0x118] sm:$0xff]
        %v1157 = vld [vmem:[%s517 + $0x120] sm:$0xff]
        %v1158 = vld [vmem:[%s517 + $0x128] sm:$0xff]
        %v1159 = vld [vmem:[%s517 + $0x130] sm:$0xff]
        %v1160 = vld [vmem:[%s517 + $0x138] sm:$0xff]
        %v1161 = vld [vmem:[%s517 + $0x140] sm:$0xff]
        %v1162 = vld [vmem:[%s517 + $0x148] sm:$0xff]
        %v1163 = vld [vmem:[%s517 + $0x150] sm:$0xff]
        %v1164 = vld [vmem:[%s517 + $0x158] sm:$0xff]
        %v1165 = vld [vmem:[%s517 + $0x160] sm:$0xff]
        %v1166 = vld [vmem:[%s517 + $0x168] sm:$0xff]
        %v1167 = vld [vmem:[%s517 + $0x170] sm:$0xff]
        %v1168 = vld [vmem:[%s517 + $0x178] sm:$0xff]
        %v1169 = vld [vmem:[%s517 + $0x180] sm:$0xff]
        %v1170 = vld [vmem:[%s517 + $0x188] sm:$0xff]
        %v1171 = vld [vmem:[%s517 + $0x190] sm:$0xff]
        %v1172 = vld [vmem:[%s517 + $0x198] sm:$0xff]
        %v1173 = vld [vmem:[%s517 + $0x1a0] sm:$0xff]
        %v1174 = vld [vmem:[%s517 + $0x1a8] sm:$0xff]
        %v1175 = vld [vmem:[%s517 + $0x1b0] sm:$0xff]
        %v1176 = vld [vmem:[%s517 + $0x1b8] sm:$0xff]
        %v1177 = vld [vmem:[%s517 + $0x1c0] sm:$0xff]
        %v1178 = vld [vmem:[%s517 + $0x1c8] sm:$0xff]
        %v1179 = vld [vmem:[%s517 + $0x1d0] sm:$0xff]
        %v1180 = vld [vmem:[%s517 + $0x1d8] sm:$0xff]
        %v1181 = vld [vmem:[%s517 + $0x1e0] sm:$0xff]
        %v1182 = vld [vmem:[%s517 + $0x1e8] sm:$0xff]
        %v1183 = vld [vmem:[%s517 + $0x1f0] sm:$0xff]
        %v1184 = vld [vmem:[%s517 + $0x1f8] sm:$0xff]
        %v1185 = vld [vmem:[%s611] sm:$0xf]
        %v1187 = vlaneseq
        %v1188 = vshrl.u32 %v1187, 7
        %v1189 = vsub.s32 0, %v1188
        %v1190 = vrot.slane %v1185, %v1189
        %v1191 = vlaneseq
        %v1192 = vshrl.u32 %v1191, 7
        %v1193 = vsub.s32 1, %v1192
        %v1194 = vrot.slane %v1185, %v1193
        %v1195 = vlaneseq
        %v1196 = vshrl.u32 %v1195, 7
        %v1197 = vsub.s32 2, %v1196
        %v1198 = vrot.slane %v1185, %v1197
        %v1199 = vlaneseq
        %v1200 = vshrl.u32 %v1199, 7
        %v1201 = vsub.s32 3, %v1200
        %v1202 = vrot.slane %v1185, %v1201
        %v1208 = vunpack.c.l.b16 %v1120
        %v1209 = vunpack.c.h.b16 %v1120
        %v1210 = vpack.c.b16 %v1208, %v1208
        %v1211 = vpack.c.b16 %v1209, %v1209
        %v1278 = vunpack.c.l.b16 %v1121
        %v1279 = vunpack.c.h.b16 %v1121
        %v1280 = vunpack.c.l.b16 %v1122
        %v1281 = vunpack.c.h.b16 %v1122
        %v1282 = vunpack.c.l.b16 %v1123
        %v1283 = vunpack.c.h.b16 %v1123
        %v1284 = vunpack.c.l.b16 %v1124
        %v1285 = vunpack.c.h.b16 %v1124
        %v1286 = vunpack.c.l.b16 %v1125
        %v1287 = vunpack.c.h.b16 %v1125
        %v1288 = vunpack.c.l.b16 %v1126
        %v1289 = vunpack.c.h.b16 %v1126
        %v1290 = vunpack.c.l.b16 %v1127
        %v1291 = vunpack.c.h.b16 %v1127
        %v1292 = vunpack.c.l.b16 %v1128
        %v1293 = vunpack.c.h.b16 %v1128
        %v1294 = vunpack.c.l.b16 %v1129
        %v1295 = vunpack.c.h.b16 %v1129
        %v1296 = vunpack.c.l.b16 %v1130
        %v1297 = vunpack.c.h.b16 %v1130
        %v1298 = vunpack.c.l.b16 %v1131
        %v1299 = vunpack.c.h.b16 %v1131
        %v1300 = vunpack.c.l.b16 %v1132
        %v1301 = vunpack.c.h.b16 %v1132
        %v1302 = vunpack.c.l.b16 %v1133
        %v1303 = vunpack.c.h.b16 %v1133
        %v1304 = vunpack.c.l.b16 %v1134
        %v1305 = vunpack.c.h.b16 %v1134
        %v1306 = vunpack.c.l.b16 %v1135
        %v1307 = vunpack.c.h.b16 %v1135
        %v1308 = vunpack.c.l.b16 %v1136
        %v1309 = vunpack.c.h.b16 %v1136
        %v1310 = vunpack.c.l.b16 %v1137
        %v1311 = vunpack.c.h.b16 %v1137
        %v1312 = vunpack.c.l.b16 %v1138
        %v1313 = vunpack.c.h.b16 %v1138
        %v1314 = vunpack.c.l.b16 %v1139
        %v1315 = vunpack.c.h.b16 %v1139
        %v1316 = vunpack.c.l.b16 %v1140
        %v1317 = vunpack.c.h.b16 %v1140
        %v1318 = vunpack.c.l.b16 %v1141
        %v1319 = vunpack.c.h.b16 %v1141
        %v1320 = vunpack.c.l.b16 %v1142
        %v1321 = vunpack.c.h.b16 %v1142
        %v1322 = vunpack.c.l.b16 %v1143
        %v1323 = vunpack.c.h.b16 %v1143
        %v1324 = vunpack.c.l.b16 %v1144
        %v1325 = vunpack.c.h.b16 %v1144
        %v1326 = vunpack.c.l.b16 %v1145
        %v1327 = vunpack.c.h.b16 %v1145
        %v1328 = vunpack.c.l.b16 %v1146
        %v1329 = vunpack.c.h.b16 %v1146
        %v1330 = vunpack.c.l.b16 %v1147
        %v1331 = vunpack.c.h.b16 %v1147
        %v1332 = vunpack.c.l.b16 %v1148
        %v1333 = vunpack.c.h.b16 %v1148
        %v1334 = vunpack.c.l.b16 %v1149
        %v1335 = vunpack.c.h.b16 %v1149
        %v1336 = vunpack.c.l.b16 %v1150
        %v1337 = vunpack.c.h.b16 %v1150
        %v1338 = vunpack.c.l.b16 %v1151
        %v1339 = vunpack.c.h.b16 %v1151
        %v1340 = vunpack.c.l.b16 %v1152
        %v1341 = vunpack.c.h.b16 %v1152
        %v1342 = vunpack.c.l.b16 %v1153
        %v1343 = vunpack.c.h.b16 %v1153
        %v1344 = vunpack.c.l.b16 %v1154
        %v1345 = vunpack.c.h.b16 %v1154
        %v1346 = vunpack.c.l.b16 %v1155
        %v1347 = vunpack.c.h.b16 %v1155
        %v1348 = vunpack.c.l.b16 %v1156
        %v1349 = vunpack.c.h.b16 %v1156
        %v1350 = vunpack.c.l.b16 %v1157
        %v1351 = vunpack.c.h.b16 %v1157
        %v1352 = vunpack.c.l.b16 %v1158
        %v1353 = vunpack.c.h.b16 %v1158
        %v1354 = vunpack.c.l.b16 %v1159
        %v1355 = vunpack.c.h.b16 %v1159
        %v1356 = vunpack.c.l.b16 %v1160
        %v1357 = vunpack.c.h.b16 %v1160
        %v1358 = vunpack.c.l.b16 %v1161
        %v1359 = vunpack.c.h.b16 %v1161
        %v1360 = vunpack.c.l.b16 %v1162
        %v1361 = vunpack.c.h.b16 %v1162
        %v1362 = vunpack.c.l.b16 %v1163
        %v1363 = vunpack.c.h.b16 %v1163
        %v1364 = vunpack.c.l.b16 %v1164
        %v1365 = vunpack.c.h.b16 %v1164
        %v1366 = vunpack.c.l.b16 %v1165
        %v1367 = vunpack.c.h.b16 %v1165
        %v1368 = vunpack.c.l.b16 %v1166
        %v1369 = vunpack.c.h.b16 %v1166
        %v1370 = vunpack.c.l.b16 %v1167
        %v1371 = vunpack.c.h.b16 %v1167
        %v1372 = vunpack.c.l.b16 %v1168
        %v1373 = vunpack.c.h.b16 %v1168
        %v1374 = vunpack.c.l.b16 %v1169
        %v1375 = vunpack.c.h.b16 %v1169
        %v1376 = vunpack.c.l.b16 %v1170
        %v1377 = vunpack.c.h.b16 %v1170
        %v1378 = vunpack.c.l.b16 %v1171
        %v1379 = vunpack.c.h.b16 %v1171
        %v1380 = vunpack.c.l.b16 %v1172
        %v1381 = vunpack.c.h.b16 %v1172
        %v1382 = vunpack.c.l.b16 %v1173
        %v1383 = vunpack.c.h.b16 %v1173
        %v1384 = vunpack.c.l.b16 %v1174
        %v1385 = vunpack.c.h.b16 %v1174
        %v1386 = vunpack.c.l.b16 %v1175
        %v1387 = vunpack.c.h.b16 %v1175
        %v1388 = vunpack.c.l.b16 %v1176
        %v1389 = vunpack.c.h.b16 %v1176
        %v1390 = vunpack.c.l.b16 %v1177
        %v1391 = vunpack.c.h.b16 %v1177
        %v1392 = vunpack.c.l.b16 %v1178
        %v1393 = vunpack.c.h.b16 %v1178
        %v1394 = vunpack.c.l.b16 %v1179
        %v1395 = vunpack.c.h.b16 %v1179
        %v1396 = vunpack.c.l.b16 %v1180
        %v1397 = vunpack.c.h.b16 %v1180
        %v1398 = vunpack.c.l.b16 %v1181
        %v1399 = vunpack.c.h.b16 %v1181
        %v1400 = vunpack.c.l.b16 %v1182
        %v1401 = vunpack.c.h.b16 %v1182
        %v1402 = vunpack.c.l.b16 %v1183
        %v1403 = vunpack.c.h.b16 %v1183
        %v1404 = vunpack.c.l.b16 %v1184
        %v1405 = vunpack.c.h.b16 %v1184
        %v1406 = vpack.c.b16 %v1282, %v1278
        %v1407 = vpack.c.b16 %v1283, %v1279
        %v1408 = vpack.c.b16 %v1284, %v1280
        %v1409 = vpack.c.b16 %v1285, %v1281
        %v1410 = vpack.c.b16 %v1290, %v1286
        %v1411 = vpack.c.b16 %v1291, %v1287
        %v1412 = vpack.c.b16 %v1292, %v1288
        %v1413 = vpack.c.b16 %v1293, %v1289
        %v1414 = vpack.c.b16 %v1298, %v1294
        %v1415 = vpack.c.b16 %v1299, %v1295
        %v1416 = vpack.c.b16 %v1300, %v1296
        %v1417 = vpack.c.b16 %v1301, %v1297
        %v1418 = vpack.c.b16 %v1306, %v1302
        %v1419 = vpack.c.b16 %v1307, %v1303
        %v1420 = vpack.c.b16 %v1308, %v1304
        %v1421 = vpack.c.b16 %v1309, %v1305
        %v1422 = vpack.c.b16 %v1314, %v1310
        %v1423 = vpack.c.b16 %v1315, %v1311
        %v1424 = vpack.c.b16 %v1316, %v1312
        %v1425 = vpack.c.b16 %v1317, %v1313
        %v1426 = vpack.c.b16 %v1322, %v1318
        %v1427 = vpack.c.b16 %v1323, %v1319
        %v1428 = vpack.c.b16 %v1324, %v1320
        %v1429 = vpack.c.b16 %v1325, %v1321
        %v1430 = vpack.c.b16 %v1330, %v1326
        %v1431 = vpack.c.b16 %v1331, %v1327
        %v1432 = vpack.c.b16 %v1332, %v1328
        %v1433 = vpack.c.b16 %v1333, %v1329
        %v1434 = vpack.c.b16 %v1338, %v1334
        %v1435 = vpack.c.b16 %v1339, %v1335
        %v1436 = vpack.c.b16 %v1340, %v1336
        %v1437 = vpack.c.b16 %v1341, %v1337
        %v1438 = vpack.c.b16 %v1346, %v1342
        %v1439 = vpack.c.b16 %v1347, %v1343
        %v1440 = vpack.c.b16 %v1348, %v1344
        %v1441 = vpack.c.b16 %v1349, %v1345
        %v1442 = vpack.c.b16 %v1354, %v1350
        %v1443 = vpack.c.b16 %v1355, %v1351
        %v1444 = vpack.c.b16 %v1356, %v1352
        %v1445 = vpack.c.b16 %v1357, %v1353
        %v1446 = vpack.c.b16 %v1362, %v1358
        %v1447 = vpack.c.b16 %v1363, %v1359
        %v1448 = vpack.c.b16 %v1364, %v1360
        %v1449 = vpack.c.b16 %v1365, %v1361
        %v1450 = vpack.c.b16 %v1370, %v1366
        %v1451 = vpack.c.b16 %v1371, %v1367
        %v1452 = vpack.c.b16 %v1372, %v1368
        %v1453 = vpack.c.b16 %v1373, %v1369
        %v1454 = vpack.c.b16 %v1378, %v1374
        %v1455 = vpack.c.b16 %v1379, %v1375
        %v1456 = vpack.c.b16 %v1380, %v1376
        %v1457 = vpack.c.b16 %v1381, %v1377
        %v1458 = vpack.c.b16 %v1386, %v1382
        %v1459 = vpack.c.b16 %v1387, %v1383
        %v1460 = vpack.c.b16 %v1388, %v1384
        %v1461 = vpack.c.b16 %v1389, %v1385
        %v1462 = vpack.c.b16 %v1394, %v1390
        %v1463 = vpack.c.b16 %v1395, %v1391
        %v1464 = vpack.c.b16 %v1396, %v1392
        %v1465 = vpack.c.b16 %v1397, %v1393
        %v1466 = vpack.c.b16 %v1402, %v1398
        %v1467 = vpack.c.b16 %v1403, %v1399
        %v1468 = vpack.c.b16 %v1404, %v1400
        %v1469 = vpack.c.b16 %v1405, %v1401
        %1534 = vmatprep.subr.bf16.mxu0 %v1407
        %1535 = vmatpush1.bf16.msra.mxu0 %v1406
        %1536 = vmatprep.subr.bf16.mxu0 %v1411
        %1537 = vmatpush1.bf16.msra.mxu0 %v1410
        %1538 = vmatprep.subr.bf16.mxu0 %v1415
        %1539 = vmatpush1.bf16.msra.mxu0 %v1414
        %1540 = vmatprep.subr.bf16.mxu0 %v1419
        %1541 = vmatpush1.bf16.msra.mxu0 %v1418
        %1542 = vmatprep.subr.bf16.mxu0 %v1423
        %1543 = vmatpush1.bf16.msra.mxu0 %v1422
        %1544 = vmatprep.subr.bf16.mxu0 %v1427
        %1545 = vmatpush1.bf16.msra.mxu0 %v1426
        %1546 = vmatprep.subr.bf16.mxu0 %v1431
        %1547 = vmatpush1.bf16.msra.mxu0 %v1430
        %1548 = vmatprep.subr.bf16.mxu0 %v1435
        %1549 = vmatpush1.bf16.msra.mxu0 %v1434
        %1550 = vmatprep.subr.bf16.mxu0 %v1439
        %1551 = vmatpush1.bf16.msra.mxu0 %v1438
        %1552 = vmatprep.subr.bf16.mxu0 %v1443
        %1553 = vmatpush1.bf16.msra.mxu0 %v1442
        %1554 = vmatprep.subr.bf16.mxu0 %v1447
        %1555 = vmatpush1.bf16.msra.mxu0 %v1446
        %1556 = vmatprep.subr.bf16.mxu0 %v1451
        %1557 = vmatpush1.bf16.msra.mxu0 %v1450
        %1558 = vmatprep.subr.bf16.mxu0 %v1455
        %1559 = vmatpush1.bf16.msra.mxu0 %v1454
        %1560 = vmatprep.subr.bf16.mxu0 %v1459
        %1561 = vmatpush1.bf16.msra.mxu0 %v1458
        %1562 = vmatprep.subr.bf16.mxu0 %v1463
        %1563 = vmatpush1.bf16.msra.mxu0 %v1462
        %1564 = vmatprep.subr.bf16.mxu0 %v1467
        %1565 = vmatpush1.bf16.msra.mxu0 %v1466
        %1566 = vmatprep.mubr.bf16.mxu0 %v1211
        %1567 = vmatmul.mubr.bf16.gmra.mrb[0].mxu0 %v1210
        %v1568 = vpop.f32.mrb[0].mxu0
        %v1569 = vadd.f32 %v1190, %v1568
        %v1570 = vpop.f32.mrb[0].mxu0
        %v1571 = vadd.f32 %v1194, %v1570
        %v1572 = vpop.f32.mrb[0].mxu0
        %v1573 = vpop.f32.mrb[0].mxu0
        %1574 = vdwg.mxu0
        %1575 = vmatprep.subr.bf16.mxu0 %v1409
        %1576 = vmatpush1.bf16.msra.mxu0 %v1408
        %1577 = vmatprep.subr.bf16.mxu0 %v1413
        %1578 = vmatpush1.bf16.msra.mxu0 %v1412
        %1579 = vmatprep.subr.bf16.mxu0 %v1417
        %1580 = vmatpush1.bf16.msra.mxu0 %v1416
        %1581 = vmatprep.subr.bf16.mxu0 %v1421
        %1582 = vmatpush1.bf16.msra.mxu0 %v1420
        %1583 = vmatprep.subr.bf16.mxu0 %v1425
        %1584 = vmatpush1.bf16.msra.mxu0 %v1424
        %1585 = vmatprep.subr.bf16.mxu0 %v1429
        %1586 = vmatpush1.bf16.msra.mxu0 %v1428
        %1587 = vmatprep.subr.bf16.mxu0 %v1433
        %1588 = vmatpush1.bf16.msra.mxu0 %v1432
        %1589 = vmatprep.subr.bf16.mxu0 %v1437
        %1590 = vmatpush1.bf16.msra.mxu0 %v1436
        %1591 = vmatprep.subr.bf16.mxu0 %v1441
        %1592 = vmatpush1.bf16.msra.mxu0 %v1440
        %1593 = vmatprep.subr.bf16.mxu0 %v1445
        %1594 = vmatpush1.bf16.msra.mxu0 %v1444
        %1595 = vmatprep.subr.bf16.mxu0 %v1449
        %1596 = vmatpush1.bf16.msra.mxu0 %v1448
        %1597 = vmatprep.subr.bf16.mxu0 %v1453
        %1598 = vmatpush1.bf16.msra.mxu0 %v1452
        %1599 = vmatprep.subr.bf16.mxu0 %v1457
        %1600 = vmatpush1.bf16.msra.mxu0 %v1456
        %1601 = vmatprep.subr.bf16.mxu0 %v1461
        %1602 = vmatpush1.bf16.msra.mxu0 %v1460
        %1603 = vmatprep.subr.bf16.mxu0 %v1465
        %1604 = vmatpush1.bf16.msra.mxu0 %v1464
        %1605 = vmatprep.subr.bf16.mxu0 %v1469
        %1606 = vmatpush1.bf16.msra.mxu0 %v1468
        %1607 = vmatprep.mubr.bf16.mxu0 %v1211
        %1608 = vmatmul.mubr.bf16.gmra.mrb[0].mxu0 %v1210
        %v1609 = vpop.f32.mrb[0].mxu0
        %v1610 = vadd.f32 %v1198, %v1609
        %v1611 = vpop.f32.mrb[0].mxu0
        %v1612 = vadd.f32 %v1202, %v1611
        %v1613 = vpop.f32.mrb[0].mxu0
        %v1614 = vpop.f32.mrb[0].mxu0
        %1615 = vdwg.mxu0
        %v1616 = vld [vmem:[%s616] sm:$0xf]
        %v1618 = vlaneseq
        %v1619 = vshrl.u32 %v1618, 7
        %v1620 = vsub.s32 0, %v1619
        %v1621 = vrot.slane %v1616, %v1620
        %v1622 = vlaneseq
        %v1623 = vshrl.u32 %v1622, 7
        %v1624 = vsub.s32 1, %v1623
        %v1625 = vrot.slane %v1616, %v1624
        %v1626 = vlaneseq
        %v1627 = vshrl.u32 %v1626, 7
        %v1628 = vsub.s32 2, %v1627
        %v1629 = vrot.slane %v1616, %v1628
        %v1630 = vlaneseq
        %v1631 = vshrl.u32 %v1630, 7
        %v1632 = vsub.s32 3, %v1631
        %v1633 = vrot.slane %v1616, %v1632
        %v1638 = vmul.f32 %v1621, %v1569
        %v1639 = vmul.f32 %v1625, %v1571
        %v1640 = vmul.f32 %v1629, %v1610
        %v1641 = vmul.f32 %v1633, %v1612
        %v1642 = vld [vmem:[%s526] sm:$0xf]
        %v1644 = vlaneseq
        %v1645 = vshrl.u32 %v1644, 7
        %v1646 = vsub.s32 0, %v1645
        %v1647 = vrot.slane %v1642, %v1646
        %v1648 = vlaneseq
        %v1649 = vshrl.u32 %v1648, 7
        %v1650 = vsub.s32 1, %v1649
        %v1651 = vrot.slane %v1642, %v1650
        %v1652 = vlaneseq
        %v1653 = vshrl.u32 %v1652, 7
        %v1654 = vsub.s32 2, %v1653
        %v1655 = vrot.slane %v1642, %v1654
        %v1656 = vlaneseq
        %v1657 = vshrl.u32 %v1656, 7
        %v1658 = vsub.s32 3, %v1657
        %v1659 = vrot.slane %v1642, %v1658
        %v1664 = vadd.f32 %v1638, %v1647
        %v1665 = vadd.f32 %v1639, %v1651
        %v1666 = vadd.f32 %v1640, %v1655
        %v1667 = vadd.f32 %v1641, %v1659
        %v1668 = vmul.f32 %v1073, %v1664
        %v1669 = vmul.f32 %v1075, %v1665
        %v1670 = vmul.f32 %v1114, %v1666
        %v1671 = vmul.f32 %v1116, %v1667
        %v1672 = vld [vmem:[%s622] sm:$0xf]
        %v1674 = vlaneseq
        %v1675 = vshrl.u32 %v1674, 7
        %v1676 = vsub.s32 0, %v1675
        %v1677 = vrot.slane %v1672, %v1676
        %v1678 = vlaneseq
        %v1679 = vshrl.u32 %v1678, 7
        %v1680 = vsub.s32 1, %v1679
        %v1681 = vrot.slane %v1672, %v1680
        %v1682 = vlaneseq
        %v1683 = vshrl.u32 %v1682, 7
        %v1684 = vsub.s32 2, %v1683
        %v1685 = vrot.slane %v1672, %v1684
        %v1686 = vlaneseq
        %v1687 = vshrl.u32 %v1686, 7
        %v1688 = vsub.s32 3, %v1687
        %v1689 = vrot.slane %v1672, %v1688
        %v1694 = vmul.f32 %v1677, %v1569
        %v1695 = vmul.f32 %v1681, %v1571
        %v1696 = vmul.f32 %v1685, %v1610
        %v1697 = vmul.f32 %v1689, %v1612
        %v1698 = vadd.f32 %v1668, %v1694
        %v1699 = vadd.f32 %v1669, %v1695
        %v1700 = vadd.f32 %v1670, %v1696
        %v1701 = vadd.f32 %v1671, %v1697
        %v1702 = vxor.u32 %v1698, 2147483648
        %v1703 = vxor.u32 %v1699, 2147483648
        %v1704 = vxor.u32 %v1700, 2147483648
        %v1705 = vmul.f32 %v1702, 1.442695
        %v1706 = vpow.pop %v1705
        %v1707 = vmul.f32 %v1703, 1.442695
        %v1708 = vpow.pop %v1707
        %v1709 = vmul.f32 %v1704, 1.442695
        %v1710 = vpow.pop %v1709
        %v1711 = vadd.f32 %v1706, 1.0
        %v1712 = vadd.f32 %v1708, 1.0
        %v1713 = vadd.f32 %v1710, 1.0
        %v1714 = vrcp.pop %v1711
        %v1715 = vmul.f32 1.0, %v1714
        %v1716 = vrcp.pop %v1712
        %v1717 = vmul.f32 1.0, %v1716
        %v1718 = vrcp.pop %v1713
        %v1719 = vmul.f32 1.0, %v1718
        %v1720 = vtanh.pop %v1701
        %v1721 = vld [vmem:[%s499] sm:$0xff]
        %v1722 = vmul.f32 %v1715, %v1721
        %v1723 = vmul.f32 %v1717, %v1720
        %v1724 = vadd.f32 %v1722, %v1723
        %v1725 = vtanh.pop %v1724
        %v1726 = vmul.f32 %v1719, %v1725
        %1727 = vst [vmem:[%s593] sm:$0xff] %v1726
        %1728 = vst [vmem:[%s600] sm:$0xff] %v1724
        %s1729 = sand.u32 %s289, 1
        %s1730 = scalar_lea.sflag [#allocation4], %s1729
        %s1731 = sand.u32 %s289, 1
        %s1732 = smul.addr %s1731, 8
        %s1733 = scalar_lea.vmem [#allocation11], %s1732
        %s1734 = sand.u32 %s315, 1
        %s1735 = scalar_lea.sflag [#allocation13], %s1734
        %s1736 = sand.u32 %s315, 1
        %s1737 = smul.addr %s1736, 8
        %s1738 = scalar_lea.vmem [#allocation12], %s1737
        // Predicated region
        $region85: #{tpu_custom_call.1} parent=59 // pred_check
          %p1739 = pneg %p299
        $region86: #{tpu_custom_call.1} parent=59 // pred_check_branch
          %1741 = sbr.rel (%p1739) target = $region88
        $region87: #{tpu_custom_call.1} parent=59 // pred_region
          %s1743 = ssub.s32 128, 128
          %1744 = vsyncadd %s1730, %s1743
          %s1745 = smul.addr %s31, 128
          %s1746 = scalar_lea.hbm %s10, %s1745
          %s1748 = sshll.u32 %s1733, 4
          %s1749 = int_to_ptr.vmem [resolvable:$true] %s1748
          %1751 = dma.vmem_to_hbm [thread:$0]  %s1749, 128, %s1746, %s1730
        $region88: #{tpu_custom_call.1} parent=59 // pred_fallthru
          _
        // Predicated region
        $region89: #{tpu_custom_call.1} parent=59 // pred_check
          %p1752 = pneg %p325
        $region90: #{tpu_custom_call.1} parent=59 // pred_check_branch
          %1754 = sbr.rel (%p1752) target = $region92
        $region91: #{tpu_custom_call.1} parent=59 // pred_region
          %s1756 = ssub.s32 128, 128
          %1757 = vsyncadd %s1735, %s1756
          %s1758 = smul.addr %s31, 128
          %s1759 = scalar_lea.hbm %s11, %s1758
          %s1761 = sshll.u32 %s1738, 4
          %s1762 = int_to_ptr.vmem [resolvable:$true] %s1761
          %1764 = dma.vmem_to_hbm [thread:$0]  %s1762, 128, %s1759, %s1735
        $region92: #{tpu_custom_call.1} parent=59 // pred_fallthru
          _
      $region60: #{tpu_custom_call.1} parent=5 // pred_fallthru
        _
      %p1765 = scmp.le.s32.totalorder 2, %s26
      // Predicated region
      $region93: #{tpu_custom_call.1} parent=5 // pred_check
        %p1766 = pneg %p1765
      $region94: #{tpu_custom_call.1} parent=5 // pred_check_branch
        %1768 = sbr.rel (%p1766) target = $region96
      $region95: #{tpu_custom_call.1} parent=5 // pred_region
        %s1769 = ssub.s32 %s26, 2
        // Predicated region
        $region97: #{tpu_custom_call.1} parent=95 // pred_check
          %p1770 = pneg %p305
        $region98: #{tpu_custom_call.1} parent=95 // pred_check_branch
          %1772 = sbr.rel (%p1770) target = $region100
        $region99: #{tpu_custom_call.1} parent=95 // pred_region
          %s1773 = sand.u32 %s290, 1
          %s1774 = scalar_lea.sflag [#allocation4], %s1773
          %s1775 = sand.u32 %s290, 1
          %s1776 = smul.addr %s1775, 8
          %s1777 = scalar_lea.vmem [#allocation11], %s1776
          %1778 = dma.done %s1774, 128
        $region100: #{tpu_custom_call.1} parent=95 // pred_fallthru
          _
        // Predicated region
        $region101: #{tpu_custom_call.1} parent=95 // pred_check
          %p1779 = pneg %p331
        $region102: #{tpu_custom_call.1} parent=95 // pred_check_branch
          %1781 = sbr.rel (%p1779) target = $region104
        $region103: #{tpu_custom_call.1} parent=95 // pred_region
          %s1782 = sand.u32 %s316, 1
          %s1783 = scalar_lea.sflag [#allocation13], %s1782
          %s1784 = sand.u32 %s316, 1
          %s1785 = smul.addr %s1784, 8
          %s1786 = scalar_lea.vmem [#allocation12], %s1785
          %1787 = dma.done %s1783, 128
        $region104: #{tpu_custom_call.1} parent=95 // pred_fallthru
          _
      $region96: #{tpu_custom_call.1} parent=5 // pred_fallthru
        _
    $region6: #{tpu_custom_call.1} parent=1 // loop_footer
      %s30 = sadd.s32 1, %s26
    $region7: #{tpu_custom_call.1} parent=1 // loop_footer_branch
      %25 = sbr.rel target = $region3
    $region8: #{tpu_custom_call.1} parent=1 // loop_exit
      _
    %1788 = vsyncpa [#allocation3], 1
    %s1789 = scalar_lea.sflag [#allocation3], 1
    %1790 = vsyncpa %s1789, 1
    %1791 = vsyncpa [#allocation6], 1
    %1792 = vsyncpa [#allocation4], 1
    %s1793 = scalar_lea.sflag [#allocation4], 1
    %1794 = vsyncpa %s1793, 1
    %1795 = vsyncpa [#allocation13], 1
    %s1796 = scalar_lea.sflag [#allocation13], 1
    %1797 = vsyncpa %s1796, 1

</llo_original>
